<compile_context>
chip_gen: v5e
topology: v5e:2x2
jax: 0.10.0
libtpu: 0.0.40
codegen_flags: <defaults>
</compile_context>

<pallas_src>
import functools

import numpy as np
import jax
import jax.numpy as jnp
from jax.experimental import pallas as pl
from jax.experimental.pallas import tpu as pltpu


FEAT_STRIDE = [16]
ANCHOR_SCALES = [8, 16, 32]
NUM_ANCHORS = 9          # 3 ratios * 3 scales
FEAT_C = 512
HEAD_PAD = 128           # lane-dense combined head output slab width


def _round_up(x, m):
    return (x + m - 1) // m * m


def _vmem_limit_bytes():
    """Generation-aware scoped-VMEM limit: 48 MiB on 128-MiB parts (v5e/v6e),
    ~25 MiB on 64-MiB parts (v7x), leaving headroom for the second TC and
    Mosaic internal scratch."""
    cap = 128 * 1024 * 1024
    try:
        info = pltpu.get_tpu_info()
        cap = int(getattr(info, "vmem_capacity_bytes", None) or cap)
    except Exception:
        pass
    return int(min(48 * 1024 * 1024, (cap * 2) // 5))


VMEM_LIMIT = _vmem_limit_bytes()


def _resident(block_shape, index_map):
    """BlockSpec for a block whose index_map is constant across the grid:
    single-buffered (double-buffering a constant block only wastes VMEM)."""
    return pl.BlockSpec(block_shape, index_map, pipeline_mode=pl.Buffered(1))


# -----------------------------------------------------------------------------
# Pallas kernel 1: backbone stand-in (16x16 patch embed, 1x1 conv + ReLU).
#   K (=768) kept whole -> single-shot relu(x@w+b) per M tile, bf16 MXU
#   operands, bf16-only output (f32 upcast happens later, fused into the
#   NCHW transpose the caller does anyway).
# -----------------------------------------------------------------------------
def _patch_embed_kernel(x_ref, w_ref, b_ref, o_ref):
    acc = jnp.dot(x_ref[...], w_ref[...], preferred_element_type=jnp.float32)
    o_ref[...] = jnp.maximum(acc + b_ref[...], 0.0).astype(jnp.bfloat16)


def patch_embed(patches_bf16, w_bf16, b_f32):
    """patches: (M, K) bf16, w: (K, N) bf16, b: (N,) f32 -> (M, N) bf16."""
    M, K = patches_bf16.shape
    N = w_bf16.shape[1]
    tm = 256 if M >= 256 else _round_up(M, 16)
    Mp = _round_up(M, tm)
    if Mp != M:
        patches_bf16 = jnp.pad(patches_bf16, ((0, Mp - M), (0, 0)))
    b2 = b_f32.reshape(1, N)

    feat_bf16 = pl.pallas_call(
        _patch_embed_kernel,
        out_shape=jax.ShapeDtypeStruct((Mp, N), jnp.bfloat16),
        grid_spec=pltpu.PrefetchScalarGridSpec(
            num_scalar_prefetch=0,
            grid=(Mp // tm,),
            in_specs=[
                pl.BlockSpec((tm, K), lambda i: (i, 0)),
                _resident((K, N), lambda i: (0, 0)),     # weight: resident
                _resident((1, N), lambda i: (0, 0)),     # bias:   resident
            ],
            out_specs=pl.BlockSpec((tm, N), lambda i: (i, 0)),
        ),
        compiler_params=pltpu.CompilerParams(
            dimension_semantics=("parallel",),
            vmem_limit_bytes=VMEM_LIMIT),
        cost_estimate=pl.CostEstimate(
            flops=2 * Mp * K * N,
            transcendentals=0,
            bytes_accessed=Mp * K * 2 + K * N * 2 + N * 4 + Mp * N * 2),
    )(patches_bf16, w_bf16, b2)
    return feat_bf16[:M]


# -----------------------------------------------------------------------------
# Pallas kernel 2: fused 3x3 conv (+ReLU) + 1x1 score/bbox heads + paired
# softmax.  The zero-padded feature map stays VMEM-resident (flattened
# (rows, C) layout, single-buffered); the 3x3 conv is 9 shifted
# contiguous-row bf16 matmuls accumulated into a VMEM f32 scratch; the heads
# use one combined 128-lane weight so the epilogue is a single lane-dense
# matmul, one lane-roll, a VPU select and an unmasked 128-wide store.
#
# Combined head column layout (A = num anchors):
#   [fg_score(A) | bg_score(A) | fg_score(A) | bg_score(A) | bbox(4A) | 0-pad]
# Lanes [A, 3A) get overwritten with the paired softmax: every lane in that
# range has its softmax partner exactly A lanes away on BOTH sides, so a
# single roll(±A) supplies it regardless of roll direction convention.
# Final per-pixel slab:
#   [fg_score | bg_prob | fg_prob | bg_score | bbox | 0-pad]
# -----------------------------------------------------------------------------
def _conv3x3_heads_kernel(x_ref, wc_ref, bc_ref, wh_ref, bh_ref, out_ref,
                          acc_ref, *, tq, wp, num_anchors):
    A = num_anchors
    q0 = pl.multiple_of(pl.program_id(0) * tq, 16)

    # 3x3 "same" conv as 9 shifted MXU matmuls accumulated in VMEM scratch.
    acc_ref[...] = jnp.dot(x_ref[pl.ds(q0, tq), :], wc_ref[0],
                           preferred_element_type=jnp.float32)
    for t in range(1, 9):
        dy, dx = divmod(t, 3)
        acc_ref[...] += jnp.dot(x_ref[pl.ds(q0 + dy * wp + dx, tq), :],
                                wc_ref[t],
                                preferred_element_type=jnp.float32)
    conv = jnp.maximum(acc_ref[...] + bc_ref[...], 0.0)       # rpn_conv1 + ReLU

    # Fused score + bbox heads: single lane-dense (C, 128) matmul.
    heads = jnp.dot(conv.astype(jnp.bfloat16), wh_ref[...],
                    preferred_element_type=jnp.float32) + bh_ref[...]

    # Paired softmax (reshape_layer(x, 2) + F.softmax) on lanes [A, 3A).
    other = pltpu.roll(heads, shift=A, axis=1)
    m = jnp.maximum(heads, other)
    e_self = jnp.exp(heads - m)
    e_other = jnp.exp(other - m)
    prob = e_self / (e_self + e_other)   # exact divide keeps NMS ordering exact

    lane = jax.lax.broadcasted_iota(jnp.int32, heads.shape, 1)
    is_prob = (lane >= A) & (lane < 3 * A)
    out_ref[...] = jnp.where(is_prob, prob, heads)


def conv3x3_heads(feat_bf16, hw, wc, bc, wh, bh, *, num_anchors):
    """feat: (Hf*Wf, C) bf16 -> (cls_score, cls_prob, bbox_pred)."""
    Hf, Wf = hw
    C = feat_bf16.shape[-1]
    head_pad = wh.shape[1]
    A = num_anchors

    # Padded row width: multiple of 16 so dy*Wp offsets stay sublane-aligned
    # (only the dx=1,2 taps misalign).
    Wp = _round_up(Wf + 2, 16)
    # Rows per grid step: tq = th*Wp >= ~256 extended pixels to amortize the
    # per-step overhead and feed the MXU M dimension.
    th = min(max(1, -(-256 // Wp)), Hf)
    Hf_p = _round_up(Hf, th)
    tq = th * Wp
    n_steps = Hf_p // th   # TODO(synk): keep even for perfect v7x megacore split

    # zero-pad: 1 top, 1 left, (Wp-Wf-1) right, (Hf_p-Hf) tile pad + 2 halo rows
    x = feat_bf16.reshape(Hf, Wf, C)
    x_flat = jnp.pad(x, ((1, Hf_p - Hf + 2), (1, Wp - Wf - 1), (0, 0))).reshape(
        (Hf_p + 3) * Wp, C)

    M_ext = Hf_p * Wp
    cost = pl.CostEstimate(
        flops=2 * M_ext * C * (9 * C + head_pad),
        transcendentals=2 * M_ext * head_pad,
        bytes_accessed=(x_flat.size * 2 + wc.size * 2 + wh.size * 2
                        + C * 4 + head_pad * 4 + M_ext * head_pad * 4))

    out_ext = pl.pallas_call(
        functools.partial(_conv3x3_heads_kernel, tq=tq, wp=Wp, num_anchors=A),
        out_shape=jax.ShapeDtypeStruct((M_ext, head_pad), jnp.float32),
        grid_spec=pltpu.PrefetchScalarGridSpec(
            num_scalar_prefetch=0,
            grid=(n_steps,),
            in_specs=[
                _resident(((Hf_p + 3) * Wp, C), lambda i: (0, 0)),   # feature map
                _resident((9, C, C), lambda i: (0, 0, 0)),           # 3x3 weights
                _resident((1, C), lambda i: (0, 0)),
                _resident((C, head_pad), lambda i: (0, 0)),
                _resident((1, head_pad), lambda i: (0, 0)),
            ],
            out_specs=pl.BlockSpec((tq, head_pad), lambda i: (i, 0)),
            scratch_shapes=[pltpu.VMEM((tq, C), jnp.float32)],       # conv acc
        ),
        compiler_params=pltpu.CompilerParams(
            dimension_semantics=("parallel",),
            vmem_limit_bytes=VMEM_LIMIT),
        cost_estimate=cost,
    )(x_flat, wc, bc.reshape(1, C), wh, bh.reshape(1, head_pad))

    # drop the junk columns per row and the bottom padding rows
    out = out_ext.reshape(Hf_p, Wp, head_pad)[:Hf, :Wf, :].reshape(
        Hf * Wf, head_pad)
    cls_prob = out[:, A:3 * A]                      # [bg_prob | fg_prob]
    bbox_pred = out[:, 4 * A:8 * A]
    cls_score = jnp.concatenate([out[:, 3 * A:4 * A], out[:, :A]], axis=-1)
    return cls_score, cls_prob, bbox_pred


# -----------------------------------------------------------------------------
# JAX glue: layout plumbing (space-to-depth for the patch embed)
# -----------------------------------------------------------------------------
def space_to_depth_nchw(image_nchw, stride):
    N, C, H, W = image_nchw.shape
    x = jnp.transpose(image_nchw, (0, 2, 3, 1))                 # NHWC
    Hf, Wf = H // stride, W // stride
    x = x.reshape(N, Hf, stride, Wf, stride, C)
    x = jnp.transpose(x, (0, 1, 3, 2, 4, 5)).reshape(N, Hf, Wf, stride * stride * C)
    return x.reshape(N * Hf * Wf, stride * stride * C), (N, Hf, Wf)


# -----------------------------------------------------------------------------
# Host-side proposal layer (numpy), matching proposal_layer_py semantics
# -----------------------------------------------------------------------------
def _whctrs(anchor):
    w = anchor[2] - anchor[0] + 1
    h = anchor[3] - anchor[1] + 1
    return w, h, anchor[0] + 0.5 * (w - 1), anchor[1] + 0.5 * (h - 1)


def _mkanchors(ws, hs, x_ctr, y_ctr):
    ws = ws[:, None]
    hs = hs[:, None]
    return np.hstack((x_ctr - 0.5 * (ws - 1), y_ctr - 0.5 * (hs - 1),
                      x_ctr + 0.5 * (ws - 1), y_ctr + 0.5 * (hs - 1)))


def _ratio_enum(anchor, ratios):
    w, h, x_ctr, y_ctr = _whctrs(anchor)
    size = w * h
    size_ratios = size / np.array(ratios, dtype=np.float64)
    ws = np.round(np.sqrt(size_ratios))
    hs = np.round(ws * np.array(ratios, dtype=np.float64))
    return _mkanchors(ws, hs, x_ctr, y_ctr)


def _scale_enum(anchor, scales):
    w, h, x_ctr, y_ctr = _whctrs(anchor)
    return _mkanchors(w * scales, h * scales, x_ctr, y_ctr)


def generate_anchors(base_size=16, ratios=(0.5, 1, 2), scales=(8, 16, 32)):
    base = np.array([1, 1, base_size, base_size], dtype=np.float64) - 1
    ratio_anchors = _ratio_enum(base, ratios)
    scales = np.array(scales, dtype=np.float64)
    return np.vstack([_scale_enum(ratio_anchors[i], scales)
                      for i in range(ratio_anchors.shape[0])]).astype(np.float32)


def bbox_transform_inv(boxes, deltas):
    widths = boxes[:, 2] - boxes[:, 0] + 1.0
    heights = boxes[:, 3] - boxes[:, 1] + 1.0
    ctr_x = boxes[:, 0] + 0.5 * widths
    ctr_y = boxes[:, 1] + 0.5 * heights
    dx, dy, dw, dh = deltas[:, 0], deltas[:, 1], deltas[:, 2], deltas[:, 3]
    pred_ctr_x = dx * widths + ctr_x
    pred_ctr_y = dy * heights + ctr_y
    pred_w = np.exp(dw) * widths
    pred_h = np.exp(dh) * heights
    pred = np.zeros_like(deltas)
    pred[:, 0] = pred_ctr_x - 0.5 * pred_w
    pred[:, 1] = pred_ctr_y - 0.5 * pred_h
    pred[:, 2] = pred_ctr_x + 0.5 * pred_w
    pred[:, 3] = pred_ctr_y + 0.5 * pred_h
    return pred


def clip_boxes(boxes, im_shape):
    boxes[:, 0] = np.clip(boxes[:, 0], 0, im_shape[1] - 1)
    boxes[:, 1] = np.clip(boxes[:, 1], 0, im_shape[0] - 1)
    boxes[:, 2] = np.clip(boxes[:, 2], 0, im_shape[1] - 1)
    boxes[:, 3] = np.clip(boxes[:, 3], 0, im_shape[0] - 1)
    return boxes


def _filter_boxes(boxes, min_size):
    ws = boxes[:, 2] - boxes[:, 0] + 1
    hs = boxes[:, 3] - boxes[:, 1] + 1
    return np.where((ws >= min_size) & (hs >= min_size))[0]


def nms(dets, thresh):
    x1, y1, x2, y2, scores = dets[:, 0], dets[:, 1], dets[:, 2], dets[:, 3], dets[:, 4]
    areas = (x2 - x1 + 1) * (y2 - y1 + 1)
    order = scores.argsort()[::-1]
    keep = []
    while order.size > 0:
        i = order[0]
        keep.append(i)
        xx1 = np.maximum(x1[i], x1[order[1:]])
        yy1 = np.maximum(y1[i], y1[order[1:]])
        xx2 = np.minimum(x2[i], x2[order[1:]])
        yy2 = np.minimum(y2[i], y2[order[1:]])
        w = np.maximum(0.0, xx2 - xx1 + 1)
        h = np.maximum(0.0, yy2 - yy1 + 1)
        inter = w * h
        ovr = inter / (areas[i] + areas[order[1:]] - inter)
        order = order[np.where(ovr <= thresh)[0] + 1]
    return keep


def proposal_layer_py(rpn_cls_prob, rpn_bbox_pred, im_info, cfg_key,
                      feat_stride, anchor_scales):
    anchors_base = generate_anchors(scales=anchor_scales)
    A = anchors_base.shape[0]
    pre_nms_topN, post_nms_topN, nms_thresh, min_size = 6000, 300, 0.7, 16

    scores = rpn_cls_prob[:, A:, :, :]
    bbox_deltas = rpn_bbox_pred
    im_info = im_info[0]
    H, W = scores.shape[-2:]

    shift_x = np.arange(0, W) * feat_stride[0]
    shift_y = np.arange(0, H) * feat_stride[0]
    shift_x, shift_y = np.meshgrid(shift_x, shift_y)
    shifts = np.vstack((shift_x.ravel(), shift_y.ravel(),
                        shift_x.ravel(), shift_y.ravel())).transpose()
    K = shifts.shape[0]
    anchors = anchors_base.reshape((1, A, 4)) + \
        shifts.reshape((1, K, 4)).transpose((1, 0, 2))
    anchors = anchors.reshape((K * A, 4)).astype(np.float32)

    bbox_deltas = bbox_deltas.transpose((0, 2, 3, 1)).reshape((-1, 4))
    scores = scores.transpose((0, 2, 3, 1)).reshape((-1, 1))

    proposals = bbox_transform_inv(anchors, bbox_deltas)
    proposals = clip_boxes(proposals, im_info[:2])
    keep = _filter_boxes(proposals, min_size * im_info[2])
    proposals, scores = proposals[keep, :], scores[keep]

    order = scores.ravel().argsort()[::-1]
    if pre_nms_topN > 0:
        order = order[:pre_nms_topN]
    proposals, scores = proposals[order, :], scores[order]

    keep = nms(np.hstack((proposals, scores)).astype(np.float32), nms_thresh)
    if post_nms_topN > 0:
        keep = keep[:post_nms_topN]
    proposals = proposals[keep, :]
    rois = np.hstack((np.zeros((proposals.shape[0], 1), dtype=np.float32),
                      proposals.astype(np.float32)))
    return rois


# -----------------------------------------------------------------------------
# Parameters & RPN forward
# -----------------------------------------------------------------------------
def init_params(key):
    k = jax.random.split(key, 4)
    std = 0.01
    A = NUM_ANCHORS
    # backbone stand-in: 16x16 patch embedding (3*16*16 -> 512), ReLU
    wf = jax.random.normal(k[0], (3 * 16 * 16, FEAT_C), jnp.float32) * std
    # rpn conv1: 3x3, layout (tap = dy*3 + dx, Cin, Cout)
    wc = jax.random.normal(k[1], (9, FEAT_C, FEAT_C), jnp.float32) * std
    # score head (2A cols, [bg | fg]) and bbox head (4A cols)
    ws = jax.random.normal(k[2], (FEAT_C, 2 * A), jnp.float32) * std
    wb = jax.random.normal(k[3], (FEAT_C, 4 * A), jnp.float32) * std
    bs = jnp.zeros((2 * A,), jnp.float32)
    bb = jnp.zeros((4 * A,), jnp.float32)
    # Combined 128-lane head weight with duplicated score columns
    # ([fg | bg | fg | bg | bbox | 0]) -- see _conv3x3_heads_kernel.
    w_bg, w_fg = ws[:, :A], ws[:, A:]
    b_bg, b_fg = bs[:A], bs[A:]
    wh = jnp.concatenate(
        [w_fg, w_bg, w_fg, w_bg, wb,
         jnp.zeros((FEAT_C, HEAD_PAD - 8 * A), jnp.float32)], axis=-1)
    bh = jnp.concatenate(
        [b_fg, b_bg, b_fg, b_bg, bb,
         jnp.zeros((HEAD_PAD - 8 * A,), jnp.float32)], axis=-1)
    return {
        "wf": wf.astype(jnp.bfloat16),
        "bf": jnp.zeros((FEAT_C,), jnp.float32),
        "wc": wc.astype(jnp.bfloat16),
        "bc": jnp.zeros((FEAT_C,), jnp.float32),
        "wh": wh.astype(jnp.bfloat16),
        "bh": bh,
    }


def rpn_forward(image_nchw, params):
    N, _, Himg, Wimg = image_nchw.shape
    assert N == 1, "proposal layer (like the original) supports batch=1"

    # pad to the feature stride so the space-to-depth reshape is always valid
    ph = (-Himg) % FEAT_STRIDE[0]
    pw = (-Wimg) % FEAT_STRIDE[0]
    if ph or pw:
        image_nchw = jnp.pad(image_nchw, ((0, 0), (0, 0), (0, ph), (0, pw)))

    # --- features (VGG16 stand-in): 16x16 patch embed + ReLU (Pallas matmul) ---
    patches, (Nf, Hf, Wf) = space_to_depth_nchw(image_nchw, FEAT_STRIDE[0])
    feat_bf16 = patch_embed(patches.astype(jnp.bfloat16),
                            params["wf"], params["bf"])
    im_info = np.array([[float(Himg), float(Wimg), 1.0]], dtype=np.float32)

    # --- fused rpn_conv1 (3x3 + ReLU) + score/bbox heads + paired softmax ---
    cls_score, cls_prob, bbox_pred = conv3x3_heads(
        feat_bf16, (Hf, Wf), params["wc"], params["bc"],
        params["wh"], params["bh"], num_anchors=NUM_ANCHORS)

    # f32 NCHW features for the module's return value (upcast fused into the
    # layout transpose -- the kernels themselves only write bf16 to HBM).
    features_nchw = jnp.transpose(
        feat_bf16.reshape(Nf, Hf, Wf, FEAT_C).astype(jnp.float32), (0, 3, 1, 2))

    jax.block_until_ready((features_nchw, cls_score, cls_prob, bbox_pred))

    # --- host-side proposal layer (numpy, like .data.cpu().numpy() original) ---
    cls_prob_nchw = np.asarray(jax.device_get(cls_prob)).reshape(
        Nf, Hf, Wf, 2 * NUM_ANCHORS).transpose(0, 3, 1, 2)
    bbox_pred_nchw = np.asarray(jax.device_get(bbox_pred)).reshape(
        Nf, Hf, Wf, 4 * NUM_ANCHORS).transpose(0, 3, 1, 2)
    rois_np = proposal_layer_py(cls_prob_nchw, bbox_pred_nchw, im_info,
                                "TEST", FEAT_STRIDE, ANCHOR_SCALES)
    rois = jnp.asarray(rois_np).reshape(-1, 5)
    return features_nchw, rois, im_info


if __name__ == "__main__":
    key = jax.random.PRNGKey(0)
    pkey, xkey = jax.random.split(key)
    params = init_params(pkey)
    # small image: 128x128 -> 8x8 feature map at stride 16
    image = jax.random.normal(xkey, (1, 3, 128, 128), jnp.float32)

    features, rois, im_info = rpn_forward(image, params)
    jax.block_until_ready((features, rois))

    assert features.shape == (1, FEAT_C, 8, 8)
    assert rois.shape[1] == 5 and rois.shape[0] > 0
    print("KERNEL_OK")
</pallas_src>

<mosaic_0001>
module attributes {stable_mosaic.version = 11 : i64} {
  func.func @_patch_embed_kernel(%arg0: i32, %arg1: memref<64x768xbf16, #tpu.memory_space<vmem>>, %arg2: memref<768x512xbf16, #tpu.memory_space<vmem>>, %arg3: memref<1x512xf32, #tpu.memory_space<vmem>>, %arg4: memref<64x512xbf16, #tpu.memory_space<vmem>>) attributes {dimension_semantics = [#tpu.dimension_semantics<parallel>], iteration_bounds = array<i64: 1>, scalar_prefetch = 0 : i64, scratch_operands = 0 : i64, tpu.core_type = #tpu.core_type<tc>, window_params = [{transform_indices = @transform_0, window_bounds = array<i64: 64, 768>}, {pipeline_mode = #tpu.pipeline_mode<synchronous>, transform_indices = @transform_1, window_bounds = array<i64: 768, 512>}, {pipeline_mode = #tpu.pipeline_mode<synchronous>, transform_indices = @transform_2, window_bounds = array<i64: 1, 512>}, {transform_indices = @transform_3, window_bounds = array<i64: 64, 512>}]} {
    %c0 = arith.constant 0 : index
    %c0_0 = arith.constant 0 : index
    %0 = vector.load %arg1[%c0, %c0_0] : memref<64x768xbf16, #tpu.memory_space<vmem>>, vector<64x768xbf16>
    %c0_1 = arith.constant 0 : index
    %c0_2 = arith.constant 0 : index
    %1 = vector.load %arg2[%c0_1, %c0_2] : memref<768x512xbf16, #tpu.memory_space<vmem>>, vector<768x512xbf16>
    %cst = arith.constant dense<0.000000e+00> : vector<64x512xf32>
    %2 = tpu.matmul %0, %1, %cst {dimension_numbers = #tpu.dot_dimension_numbers<[1], [0], [0], [1], [0, 0, 1, 1], [], []>} : vector<64x768xbf16>, vector<768x512xbf16>, vector<64x512xf32> -> vector<64x512xf32>
    %c0_3 = arith.constant 0 : index
    %c0_4 = arith.constant 0 : index
    %3 = vector.load %arg3[%c0_3, %c0_4] : memref<1x512xf32, #tpu.memory_space<vmem>>, vector<1x512xf32>
    %4 = vector.broadcast %3 : vector<1x512xf32> to vector<64x512xf32>
    %5 = arith.addf %2, %4 : vector<64x512xf32>
    %cst_5 = arith.constant 0.000000e+00 : f32
    %6 = vector.broadcast %cst_5 : f32 to vector<64x512xf32>
    %7 = arith.maximumf %5, %6 : vector<64x512xf32>
    %8 = arith.truncf %7 : vector<64x512xf32> to vector<64x512xbf16>
    %c0_6 = arith.constant 0 : index
    %c0_7 = arith.constant 0 : index
    %9 = vector.load %arg4[%c0_6, %c0_7] : memref<64x512xbf16, #tpu.memory_space<vmem>>, vector<64x512xbf16>
    tpu.vector_store %arg4[%c0_6, %c0_7], %8 {strides = array<i32>} : memref<64x512xbf16, #tpu.memory_space<vmem>>, vector<64x512xbf16>,
    return
  }
  func.func @transform_0(%arg0: i32) -> (i32, i32) {
    %c0_i32 = arith.constant 0 : i32
    %c0_i32_0 = arith.constant 0 : i32
    return %arg0, %c0_i32 : i32, i32
  }
  func.func @transform_1(%arg0: i32) -> (i32, i32) {
    %c0_i32 = arith.constant 0 : i32
    %c0_i32_0 = arith.constant 0 : i32
    %c0_i32_1 = arith.constant 0 : i32
    return %c0_i32, %c0_i32_0 : i32, i32
  }
  func.func @transform_2(%arg0: i32) -> (i32, i32) {
    %c0_i32 = arith.constant 0 : i32
    %c0_i32_0 = arith.constant 0 : i32
    %c0_i32_1 = arith.constant 0 : i32
    return %c0_i32, %c0_i32_0 : i32, i32
  }
  func.func @transform_3(%arg0: i32) -> (i32, i32) {
    %c0_i32 = arith.constant 0 : i32
    %c0_i32_0 = arith.constant 0 : i32
    return %arg0, %c0_i32 : i32, i32
  }
}

</mosaic_0001>

<llo_original>
// kernel: tpu_custom_call.1
$region0: #{tpu_custom_call.1}
  #allocation0 [shape = 'u32[]', space=smem, size = 0x4, offset = 0x4, fixed_abs, tag = 'smem constant byte address 0x4 - core index']
  #allocation1 [shape = 'u32[72,128]{1,0:T(1,128)}', space=vmem, size = 0x9000, scoped, tag = 'internal scratch']
  %s0 = inlined_call_operand.hbm [shape: bf16[64,768], index: 0, kind: input, shape index: {}]
  %s1 = inlined_call_operand.hbm [shape: bf16[768,512], index: 1, kind: input, shape index: {}]
  %s2 = inlined_call_operand.hbm [shape: f32[1,512], index: 2, kind: input, shape index: {}]
  %s3 = inlined_call_operand.hbm [shape: bf16[64,512], index: 3, kind: output, shape index: {}]
  %s4 = sld [smem:[#allocation0]]
  $region34: #{tpu_custom_call.1} parent=0
    _
  %s6 = ssub.s32 1, %s4
  %s7 = scalar_select 0, %s6, %s4
  $region1: #{tpu_custom_call.1} parent=0
    #allocation2 [shape = 'u8[98304]{0}', space=vmem, size = 0x18000, scoped, tag = 'input window, operand 0, single buffered']
    #allocation3 [shape = 's32[1]{0}', space=sflag, size = 0x4, scoped, tag = 'scoped memory for tpu_custom_call.1']
    #allocation4 [shape = 's32[1]{0}', space=sflag, size = 0x4, scoped, tag = 'scoped memory for tpu_custom_call.1']
    #allocation5 [shape = 'u8[786432]{0}', space=vmem, size = 0xc0000, scoped, tag = 'input window, operand 1, single buffered']
    #allocation6 [shape = 's32[1]{0}', space=sflag, size = 0x4, scoped, tag = 'scoped memory for tpu_custom_call.1']
    #allocation7 [shape = 'u8[2048]{0}', space=vmem, size = 0x800, scoped, tag = 'input window, operand 2, single buffered']
    #allocation8 [shape = 'u8[65536]{0}', space=vmem, size = 0x10000, scoped, tag = 'output window, operand 0, single buffered']
    %8 = vsyncpa [#allocation3], 0
    %9 = vsyncpa [#allocation6], 0
    %10 = vsyncpa [#allocation4], 0
    // Predicated region
    $region2: #{tpu_custom_call.1} parent=1 // pred_check
      _
    $region3: #{tpu_custom_call.1} parent=1 // pred_check_branch
      %12 = sbr.rel (0) target = $region5
    $region4: #{tpu_custom_call.1} parent=1 // pred_region
      %14 = vsyncadd [#allocation3], 0
      %s15 = sshll.u32 %s0, 4
      %s16 = int_to_ptr.hbm [resolvable:$true] %s15
      %s17 = sshll.u32 [#allocation2], 4
      %s18 = int_to_ptr.vmem [resolvable:$true] %s17
      %23 = dma.hbm_to_vmem [thread:$0]  %s16, 3072, %s18, [#allocation3], 384, 384, 24
    $region5: #{tpu_custom_call.1} parent=1 // pred_fallthru
      _
    // Predicated region
    $region6: #{tpu_custom_call.1} parent=1 // pred_check
      _
    $region7: #{tpu_custom_call.1} parent=1 // pred_check_branch
      %25 = sbr.rel (0) target = $region9
    $region8: #{tpu_custom_call.1} parent=1 // pred_region
      %27 = vsyncadd [#allocation6], 0
      %s28 = sshll.u32 %s1, 4
      %s29 = int_to_ptr.hbm [resolvable:$true] %s28
      %s30 = sshll.u32 [#allocation5], 4
      %s31 = int_to_ptr.vmem [resolvable:$true] %s30
      %36 = dma.hbm_to_vmem [thread:$0]  %s29, 24576, %s31, [#allocation6], 256, 256, 16
    $region9: #{tpu_custom_call.1} parent=1 // pred_fallthru
      _
    // Predicated region
    $region10: #{tpu_custom_call.1} parent=1 // pred_check
      _
    $region11: #{tpu_custom_call.1} parent=1 // pred_check_branch
      %38 = sbr.rel (0) target = $region13
    $region12: #{tpu_custom_call.1} parent=1 // pred_region
      %40 = vsyncadd [#allocation6], 0
      %s42 = sshll.u32 %s2, 4
      %s43 = int_to_ptr.hbm [resolvable:$true] %s42
      %s44 = sshll.u32 [#allocation7], 4
      %s45 = int_to_ptr.vmem [resolvable:$true] %s44
      %47 = dma.hbm_to_vmem [thread:$0]  %s43, 64, %s45, [#allocation6]
    $region13: #{tpu_custom_call.1} parent=1 // pred_fallthru
      _
    // Predicated region
    $region14: #{tpu_custom_call.1} parent=1 // pred_check
      _
    $region15: #{tpu_custom_call.1} parent=1 // pred_check_branch
      %49 = sbr.rel (0) target = $region17
    $region16: #{tpu_custom_call.1} parent=1 // pred_region
      %51 = dma.done [#allocation3], 3072
    $region17: #{tpu_custom_call.1} parent=1 // pred_fallthru
      _
    // Predicated region
    $region18: #{tpu_custom_call.1} parent=1 // pred_check
      _
    $region19: #{tpu_custom_call.1} parent=1 // pred_check_branch
      %53 = sbr.rel (0) target = $region21
    $region20: #{tpu_custom_call.1} parent=1 // pred_region
      %55 = dma.done [#allocation6], 24576
    $region21: #{tpu_custom_call.1} parent=1 // pred_fallthru
      _
    // Predicated region
    $region22: #{tpu_custom_call.1} parent=1 // pred_check
      _
    $region23: #{tpu_custom_call.1} parent=1 // pred_check_branch
      %57 = sbr.rel (0) target = $region25
    $region24: #{tpu_custom_call.1} parent=1 // pred_region
      %59 = dma.done [#allocation6], 64
    $region25: #{tpu_custom_call.1} parent=1 // pred_fallthru
      _
    %v60 = vld [vmem:[#allocation2] sm:$0xff]
    %v61 = vld [vmem:[#allocation2 + $0x8] sm:$0xff]
    %v62 = vld [vmem:[#allocation2 + $0x10] sm:$0xff]
    %v63 = vld [vmem:[#allocation2 + $0x18] sm:$0xff]
    %v64 = vld [vmem:[#allocation2 + $0x20] sm:$0xff]
    %v65 = vld [vmem:[#allocation2 + $0x28] sm:$0xff]
    %v66 = vld [vmem:[#allocation2 + $0x30] sm:$0xff]
    %v67 = vld [vmem:[#allocation2 + $0x38] sm:$0xff]
    %v68 = vld [vmem:[#allocation2 + $0x40] sm:$0xff]
    %v69 = vld [vmem:[#allocation2 + $0x48] sm:$0xff]
    %v70 = vld [vmem:[#allocation2 + $0x50] sm:$0xff]
    %v71 = vld [vmem:[#allocation2 + $0x58] sm:$0xff]
    %v72 = vld [vmem:[#allocation2 + $0x60] sm:$0xff]
    %v73 = vld [vmem:[#allocation2 + $0x68] sm:$0xff]
    %v74 = vld [vmem:[#allocation2 + $0x70] sm:$0xff]
    %v75 = vld [vmem:[#allocation2 + $0x78] sm:$0xff]
    %v76 = vld [vmem:[#allocation2 + $0x80] sm:$0xff]
    %v77 = vld [vmem:[#allocation2 + $0x88] sm:$0xff]
    %v78 = vld [vmem:[#allocation2 + $0x90] sm:$0xff]
    %v79 = vld [vmem:[#allocation2 + $0x98] sm:$0xff]
    %v80 = vld [vmem:[#allocation2 + $0xa0] sm:$0xff]
    %v81 = vld [vmem:[#allocation2 + $0xa8] sm:$0xff]
    %v82 = vld [vmem:[#allocation2 + $0xb0] sm:$0xff]
    %v83 = vld [vmem:[#allocation2 + $0xb8] sm:$0xff]
    %v84 = vld [vmem:[#allocation5] sm:$0xff]
    %v85 = vld [vmem:[#allocation5 + $0x8] sm:$0xff]
    %v86 = vld [vmem:[#allocation5 + $0x10] sm:$0xff]
    %v87 = vld [vmem:[#allocation5 + $0x18] sm:$0xff]
    %v88 = vld [vmem:[#allocation5 + $0x20] sm:$0xff]
    %v89 = vld [vmem:[#allocation5 + $0x28] sm:$0xff]
    %v90 = vld [vmem:[#allocation5 + $0x30] sm:$0xff]
    %v91 = vld [vmem:[#allocation5 + $0x38] sm:$0xff]
    %v92 = vld [vmem:[#allocation5 + $0x40] sm:$0xff]
    %v93 = vld [vmem:[#allocation5 + $0x48] sm:$0xff]
    %v94 = vld [vmem:[#allocation5 + $0x50] sm:$0xff]
    %v95 = vld [vmem:[#allocation5 + $0x58] sm:$0xff]
    %v96 = vld [vmem:[#allocation5 + $0x60] sm:$0xff]
    %v97 = vld [vmem:[#allocation5 + $0x68] sm:$0xff]
    %v98 = vld [vmem:[#allocation5 + $0x70] sm:$0xff]
    %v99 = vld [vmem:[#allocation5 + $0x78] sm:$0xff]
    %v100 = vld [vmem:[#allocation5 + $0x80] sm:$0xff]
    %v101 = vld [vmem:[#allocation5 + $0x88] sm:$0xff]
    %v102 = vld [vmem:[#allocation5 + $0x90] sm:$0xff]
    %v103 = vld [vmem:[#allocation5 + $0x98] sm:$0xff]
    %v104 = vld [vmem:[#allocation5 + $0xa0] sm:$0xff]
    %v105 = vld [vmem:[#allocation5 + $0xa8] sm:$0xff]
    %v106 = vld [vmem:[#allocation5 + $0xb0] sm:$0xff]
    %v107 = vld [vmem:[#allocation5 + $0xb8] sm:$0xff]
    %v108 = vld [vmem:[#allocation5 + $0xc0] sm:$0xff]
    %v109 = vld [vmem:[#allocation5 + $0xc8] sm:$0xff]
    %v110 = vld [vmem:[#allocation5 + $0xd0] sm:$0xff]
    %v111 = vld [vmem:[#allocation5 + $0xd8] sm:$0xff]
    %v112 = vld [vmem:[#allocation5 + $0xe0] sm:$0xff]
    %v113 = vld [vmem:[#allocation5 + $0xe8] sm:$0xff]
    %v114 = vld [vmem:[#allocation5 + $0xf0] sm:$0xff]
    %v115 = vld [vmem:[#allocation5 + $0xf8] sm:$0xff]
    %v116 = vld [vmem:[#allocation5 + $0x100] sm:$0xff]
    %v117 = vld [vmem:[#allocation5 + $0x108] sm:$0xff]
    %v118 = vld [vmem:[#allocation5 + $0x110] sm:$0xff]
    %v119 = vld [vmem:[#allocation5 + $0x118] sm:$0xff]
    %v120 = vld [vmem:[#allocation5 + $0x120] sm:$0xff]
    %v121 = vld [vmem:[#allocation5 + $0x128] sm:$0xff]
    %v122 = vld [vmem:[#allocation5 + $0x130] sm:$0xff]
    %v123 = vld [vmem:[#allocation5 + $0x138] sm:$0xff]
    %v124 = vld [vmem:[#allocation5 + $0x140] sm:$0xff]
    %v125 = vld [vmem:[#allocation5 + $0x148] sm:$0xff]
    %v126 = vld [vmem:[#allocation5 + $0x150] sm:$0xff]
    %v127 = vld [vmem:[#allocation5 + $0x158] sm:$0xff]
    %v128 = vld [vmem:[#allocation5 + $0x160] sm:$0xff]
    %v129 = vld [vmem:[#allocation5 + $0x168] sm:$0xff]
    %v130 = vld [vmem:[#allocation5 + $0x170] sm:$0xff]
    %v131 = vld [vmem:[#allocation5 + $0x178] sm:$0xff]
    %v132 = vld [vmem:[#allocation5 + $0x180] sm:$0xff]
    %v133 = vld [vmem:[#allocation5 + $0x188] sm:$0xff]
    %v134 = vld [vmem:[#allocation5 + $0x190] sm:$0xff]
    %v135 = vld [vmem:[#allocation5 + $0x198] sm:$0xff]
    %v136 = vld [vmem:[#allocation5 + $0x1a0] sm:$0xff]
    %v137 = vld [vmem:[#allocation5 + $0x1a8] sm:$0xff]
    %v138 = vld [vmem:[#allocation5 + $0x1b0] sm:$0xff]
    %v139 = vld [vmem:[#allocation5 + $0x1b8] sm:$0xff]
    %v140 = vld [vmem:[#allocation5 + $0x1c0] sm:$0xff]
    %v141 = vld [vmem:[#allocation5 + $0x1c8] sm:$0xff]
    %v142 = vld [vmem:[#allocation5 + $0x1d0] sm:$0xff]
    %v143 = vld [vmem:[#allocation5 + $0x1d8] sm:$0xff]
    %v144 = vld [vmem:[#allocation5 + $0x1e0] sm:$0xff]
    %v145 = vld [vmem:[#allocation5 + $0x1e8] sm:$0xff]
    %v146 = vld [vmem:[#allocation5 + $0x1f0] sm:$0xff]
    %v147 = vld [vmem:[#allocation5 + $0x1f8] sm:$0xff]
    %v148 = vld [vmem:[#allocation5 + $0x200] sm:$0xff]
    %v149 = vld [vmem:[#allocation5 + $0x208] sm:$0xff]
    %v150 = vld [vmem:[#allocation5 + $0x210] sm:$0xff]
    %v151 = vld [vmem:[#allocation5 + $0x218] sm:$0xff]
    %v152 = vld [vmem:[#allocation5 + $0x220] sm:$0xff]
    %v153 = vld [vmem:[#allocation5 + $0x228] sm:$0xff]
    %v154 = vld [vmem:[#allocation5 + $0x230] sm:$0xff]
    %v155 = vld [vmem:[#allocation5 + $0x238] sm:$0xff]
    %v156 = vld [vmem:[#allocation5 + $0x240] sm:$0xff]
    %v157 = vld [vmem:[#allocation5 + $0x248] sm:$0xff]
    %v158 = vld [vmem:[#allocation5 + $0x250] sm:$0xff]
    %v159 = vld [vmem:[#allocation5 + $0x258] sm:$0xff]
    %v160 = vld [vmem:[#allocation5 + $0x260] sm:$0xff]
    %v161 = vld [vmem:[#allocation5 + $0x268] sm:$0xff]
    %v162 = vld [vmem:[#allocation5 + $0x270] sm:$0xff]
    %v163 = vld [vmem:[#allocation5 + $0x278] sm:$0xff]
    %v164 = vld [vmem:[#allocation5 + $0x280] sm:$0xff]
    %v165 = vld [vmem:[#allocation5 + $0x288] sm:$0xff]
    %v166 = vld [vmem:[#allocation5 + $0x290] sm:$0xff]
    %v167 = vld [vmem:[#allocation5 + $0x298] sm:$0xff]
    %v168 = vld [vmem:[#allocation5 + $0x2a0] sm:$0xff]
    %v169 = vld [vmem:[#allocation5 + $0x2a8] sm:$0xff]
    %v170 = vld [vmem:[#allocation5 + $0x2b0] sm:$0xff]
    %v171 = vld [vmem:[#allocation5 + $0x2b8] sm:$0xff]
    %v172 = vld [vmem:[#allocation5 + $0x2c0] sm:$0xff]
    %v173 = vld [vmem:[#allocation5 + $0x2c8] sm:$0xff]
    %v174 = vld [vmem:[#allocation5 + $0x2d0] sm:$0xff]
    %v175 = vld [vmem:[#allocation5 + $0x2d8] sm:$0xff]
    %v176 = vld [vmem:[#allocation5 + $0x2e0] sm:$0xff]
    %v177 = vld [vmem:[#allocation5 + $0x2e8] sm:$0xff]
    %v178 = vld [vmem:[#allocation5 + $0x2f0] sm:$0xff]
    %v179 = vld [vmem:[#allocation5 + $0x2f8] sm:$0xff]
    %v180 = vld [vmem:[#allocation5 + $0x300] sm:$0xff]
    %v181 = vld [vmem:[#allocation5 + $0x308] sm:$0xff]
    %v182 = vld [vmem:[#allocation5 + $0x310] sm:$0xff]
    %v183 = vld [vmem:[#allocation5 + $0x318] sm:$0xff]
    %v184 = vld [vmem:[#allocation5 + $0x320] sm:$0xff]
    %v185 = vld [vmem:[#allocation5 + $0x328] sm:$0xff]
    %v186 = vld [vmem:[#allocation5 + $0x330] sm:$0xff]
    %v187 = vld [vmem:[#allocation5 + $0x338] sm:$0xff]
    %v188 = vld [vmem:[#allocation5 + $0x340] sm:$0xff]
    %v189 = vld [vmem:[#allocation5 + $0x348] sm:$0xff]
    %v190 = vld [vmem:[#allocation5 + $0x350] sm:$0xff]
    %v191 = vld [vmem:[#allocation5 + $0x358] sm:$0xff]
    %v192 = vld [vmem:[#allocation5 + $0x360] sm:$0xff]
    %v193 = vld [vmem:[#allocation5 + $0x368] sm:$0xff]
    %v194 = vld [vmem:[#allocation5 + $0x370] sm:$0xff]
    %v195 = vld [vmem:[#allocation5 + $0x378] sm:$0xff]
    %v196 = vld [vmem:[#allocation5 + $0x380] sm:$0xff]
    %v197 = vld [vmem:[#allocation5 + $0x388] sm:$0xff]
    %v198 = vld [vmem:[#allocation5 + $0x390] sm:$0xff]
    %v199 = vld [vmem:[#allocation5 + $0x398] sm:$0xff]
    %v200 = vld [vmem:[#allocation5 + $0x3a0] sm:$0xff]
    %v201 = vld [vmem:[#allocation5 + $0x3a8] sm:$0xff]
    %v202 = vld [vmem:[#allocation5 + $0x3b0] sm:$0xff]
    %v203 = vld [vmem:[#allocation5 + $0x3b8] sm:$0xff]
    %v204 = vld [vmem:[#allocation5 + $0x3c0] sm:$0xff]
    %v205 = vld [vmem:[#allocation5 + $0x3c8] sm:$0xff]
    %v206 = vld [vmem:[#allocation5 + $0x3d0] sm:$0xff]
    %v207 = vld [vmem:[#allocation5 + $0x3d8] sm:$0xff]
    %v208 = vld [vmem:[#allocation5 + $0x3e0] sm:$0xff]
    %v209 = vld [vmem:[#allocation5 + $0x3e8] sm:$0xff]
    %v210 = vld [vmem:[#allocation5 + $0x3f0] sm:$0xff]
    %v211 = vld [vmem:[#allocation5 + $0x3f8] sm:$0xff]
    %v212 = vld [vmem:[#allocation5 + $0x400] sm:$0xff]
    %v213 = vld [vmem:[#allocation5 + $0x408] sm:$0xff]
    %v214 = vld [vmem:[#allocation5 + $0x410] sm:$0xff]
    %v215 = vld [vmem:[#allocation5 + $0x418] sm:$0xff]
    %v216 = vld [vmem:[#allocation5 + $0x420] sm:$0xff]
    %v217 = vld [vmem:[#allocation5 + $0x428] sm:$0xff]
    %v218 = vld [vmem:[#allocation5 + $0x430] sm:$0xff]
    %v219 = vld [vmem:[#allocation5 + $0x438] sm:$0xff]
    %v220 = vld [vmem:[#allocation5 + $0x440] sm:$0xff]
    %v221 = vld [vmem:[#allocation5 + $0x448] sm:$0xff]
    %v222 = vld [vmem:[#allocation5 + $0x450] sm:$0xff]
    %v223 = vld [vmem:[#allocation5 + $0x458] sm:$0xff]
    %v224 = vld [vmem:[#allocation5 + $0x460] sm:$0xff]
    %v225 = vld [vmem:[#allocation5 + $0x468] sm:$0xff]
    %v226 = vld [vmem:[#allocation5 + $0x470] sm:$0xff]
    %v227 = vld [vmem:[#allocation5 + $0x478] sm:$0xff]
    %v228 = vld [vmem:[#allocation5 + $0x480] sm:$0xff]
    %v229 = vld [vmem:[#allocation5 + $0x488] sm:$0xff]
    %v230 = vld [vmem:[#allocation5 + $0x490] sm:$0xff]
    %v231 = vld [vmem:[#allocation5 + $0x498] sm:$0xff]
    %v232 = vld [vmem:[#allocation5 + $0x4a0] sm:$0xff]
    %v233 = vld [vmem:[#allocation5 + $0x4a8] sm:$0xff]
    %v234 = vld [vmem:[#allocation5 + $0x4b0] sm:$0xff]
    %v235 = vld [vmem:[#allocation5 + $0x4b8] sm:$0xff]
    %v236 = vld [vmem:[#allocation5 + $0x4c0] sm:$0xff]
    %v237 = vld [vmem:[#allocation5 + $0x4c8] sm:$0xff]
    %v238 = vld [vmem:[#allocation5 + $0x4d0] sm:$0xff]
    %v239 = vld [vmem:[#allocation5 + $0x4d8] sm:$0xff]
    %v240 = vld [vmem:[#allocation5 + $0x4e0] sm:$0xff]
    %v241 = vld [vmem:[#allocation5 + $0x4e8] sm:$0xff]
    %v242 = vld [vmem:[#allocation5 + $0x4f0] sm:$0xff]
    %v243 = vld [vmem:[#allocation5 + $0x4f8] sm:$0xff]
    %v244 = vld [vmem:[#allocation5 + $0x500] sm:$0xff]
    %v245 = vld [vmem:[#allocation5 + $0x508] sm:$0xff]
    %v246 = vld [vmem:[#allocation5 + $0x510] sm:$0xff]
    %v247 = vld [vmem:[#allocation5 + $0x518] sm:$0xff]
    %v248 = vld [vmem:[#allocation5 + $0x520] sm:$0xff]
    %v249 = vld [vmem:[#allocation5 + $0x528] sm:$0xff]
    %v250 = vld [vmem:[#allocation5 + $0x530] sm:$0xff]
    %v251 = vld [vmem:[#allocation5 + $0x538] sm:$0xff]
    %v252 = vld [vmem:[#allocation5 + $0x540] sm:$0xff]
    %v253 = vld [vmem:[#allocation5 + $0x548] sm:$0xff]
    %v254 = vld [vmem:[#allocation5 + $0x550] sm:$0xff]
    %v255 = vld [vmem:[#allocation5 + $0x558] sm:$0xff]
    %v256 = vld [vmem:[#allocation5 + $0x560] sm:$0xff]
    %v257 = vld [vmem:[#allocation5 + $0x568] sm:$0xff]
    %v258 = vld [vmem:[#allocation5 + $0x570] sm:$0xff]
    %v259 = vld [vmem:[#allocation5 + $0x578] sm:$0xff]
    %v260 = vld [vmem:[#allocation5 + $0x580] sm:$0xff]
    %v261 = vld [vmem:[#allocation5 + $0x588] sm:$0xff]
    %v262 = vld [vmem:[#allocation5 + $0x590] sm:$0xff]
    %v263 = vld [vmem:[#allocation5 + $0x598] sm:$0xff]
    %v264 = vld [vmem:[#allocation5 + $0x5a0] sm:$0xff]
    %v265 = vld [vmem:[#allocation5 + $0x5a8] sm:$0xff]
    %v266 = vld [vmem:[#allocation5 + $0x5b0] sm:$0xff]
    %v267 = vld [vmem:[#allocation5 + $0x5b8] sm:$0xff]
    %v268 = vld [vmem:[#allocation5 + $0x5c0] sm:$0xff]
    %v269 = vld [vmem:[#allocation5 + $0x5c8] sm:$0xff]
    %v270 = vld [vmem:[#allocation5 + $0x5d0] sm:$0xff]
    %v271 = vld [vmem:[#allocation5 + $0x5d8] sm:$0xff]
    %v272 = vld [vmem:[#allocation5 + $0x5e0] sm:$0xff]
    %v273 = vld [vmem:[#allocation5 + $0x5e8] sm:$0xff]
    %v274 = vld [vmem:[#allocation5 + $0x5f0] sm:$0xff]
    %v275 = vld [vmem:[#allocation5 + $0x5f8] sm:$0xff]
    %v276 = vld [vmem:[#allocation7] sm:$0xf]
    %v278 = vperm.slane %v276, 0
    %v279 = vperm.slane %v276, 1
    %v280 = vperm.slane %v276, 2
    %v281 = vperm.slane %v276, 3
    %v310 = vunpack.c.l.b16 %v60
    %v311 = vunpack.c.h.b16 %v60
    %v312 = vunpack.c.l.b16 %v61
    %v313 = vunpack.c.h.b16 %v61
    %v314 = vunpack.c.l.b16 %v62
    %v315 = vunpack.c.h.b16 %v62
    %v316 = vunpack.c.l.b16 %v63
    %v317 = vunpack.c.h.b16 %v63
    %v318 = vunpack.c.l.b16 %v64
    %v319 = vunpack.c.h.b16 %v64
    %v320 = vunpack.c.l.b16 %v65
    %v321 = vunpack.c.h.b16 %v65
    %v322 = vunpack.c.l.b16 %v66
    %v323 = vunpack.c.h.b16 %v66
    %v324 = vunpack.c.l.b16 %v67
    %v325 = vunpack.c.h.b16 %v67
    %v326 = vunpack.c.l.b16 %v68
    %v327 = vunpack.c.h.b16 %v68
    %v328 = vunpack.c.l.b16 %v69
    %v329 = vunpack.c.h.b16 %v69
    %v330 = vunpack.c.l.b16 %v70
    %v331 = vunpack.c.h.b16 %v70
    %v332 = vunpack.c.l.b16 %v71
    %v333 = vunpack.c.h.b16 %v71
    %v334 = vunpack.c.l.b16 %v72
    %v335 = vunpack.c.h.b16 %v72
    %v336 = vunpack.c.l.b16 %v73
    %v337 = vunpack.c.h.b16 %v73
    %v338 = vunpack.c.l.b16 %v74
    %v339 = vunpack.c.h.b16 %v74
    %v340 = vunpack.c.l.b16 %v75
    %v341 = vunpack.c.h.b16 %v75
    %v342 = vunpack.c.l.b16 %v76
    %v343 = vunpack.c.h.b16 %v76
    %v344 = vunpack.c.l.b16 %v77
    %v345 = vunpack.c.h.b16 %v77
    %v346 = vunpack.c.l.b16 %v78
    %v347 = vunpack.c.h.b16 %v78
    %v348 = vunpack.c.l.b16 %v79
    %v349 = vunpack.c.h.b16 %v79
    %v350 = vunpack.c.l.b16 %v80
    %v351 = vunpack.c.h.b16 %v80
    %v352 = vunpack.c.l.b16 %v81
    %v353 = vunpack.c.h.b16 %v81
    %v354 = vunpack.c.l.b16 %v82
    %v355 = vunpack.c.h.b16 %v82
    %v356 = vunpack.c.l.b16 %v83
    %v357 = vunpack.c.h.b16 %v83
    %v358 = vpack.c.b16 %v316, %v310
    %v359 = vpack.c.b16 %v317, %v311
    %v360 = vpack.c.b16 %v318, %v312
    %v361 = vpack.c.b16 %v319, %v313
    %v362 = vpack.c.b16 %v320, %v314
    %v363 = vpack.c.b16 %v321, %v315
    %v364 = vpack.c.b16 %v328, %v322
    %v365 = vpack.c.b16 %v329, %v323
    %v366 = vpack.c.b16 %v330, %v324
    %v367 = vpack.c.b16 %v331, %v325
    %v368 = vpack.c.b16 %v332, %v326
    %v369 = vpack.c.b16 %v333, %v327
    %v370 = vpack.c.b16 %v340, %v334
    %v371 = vpack.c.b16 %v341, %v335
    %v372 = vpack.c.b16 %v342, %v336
    %v373 = vpack.c.b16 %v343, %v337
    %v374 = vpack.c.b16 %v344, %v338
    %v375 = vpack.c.b16 %v345, %v339
    %v376 = vpack.c.b16 %v352, %v346
    %v377 = vpack.c.b16 %v353, %v347
    %v378 = vpack.c.b16 %v354, %v348
    %v379 = vpack.c.b16 %v355, %v349
    %v380 = vpack.c.b16 %v356, %v350
    %v381 = vpack.c.b16 %v357, %v351
    %v598 = vunpack.c.l.b16 %v84
    %v599 = vunpack.c.h.b16 %v84
    %v600 = vunpack.c.l.b16 %v85
    %v601 = vunpack.c.h.b16 %v85
    %v602 = vunpack.c.l.b16 %v86
    %v603 = vunpack.c.h.b16 %v86
    %v604 = vunpack.c.l.b16 %v87
    %v605 = vunpack.c.h.b16 %v87
    %v606 = vunpack.c.l.b16 %v88
    %v607 = vunpack.c.h.b16 %v88
    %v608 = vunpack.c.l.b16 %v89
    %v609 = vunpack.c.h.b16 %v89
    %v610 = vunpack.c.l.b16 %v90
    %v611 = vunpack.c.h.b16 %v90
    %v612 = vunpack.c.l.b16 %v91
    %v613 = vunpack.c.h.b16 %v91
    %v614 = vunpack.c.l.b16 %v92
    %v615 = vunpack.c.h.b16 %v92
    %v616 = vunpack.c.l.b16 %v93
    %v617 = vunpack.c.h.b16 %v93
    %v618 = vunpack.c.l.b16 %v94
    %v619 = vunpack.c.h.b16 %v94
    %v620 = vunpack.c.l.b16 %v95
    %v621 = vunpack.c.h.b16 %v95
    %v622 = vunpack.c.l.b16 %v96
    %v623 = vunpack.c.h.b16 %v96
    %v624 = vunpack.c.l.b16 %v97
    %v625 = vunpack.c.h.b16 %v97
    %v626 = vunpack.c.l.b16 %v98
    %v627 = vunpack.c.h.b16 %v98
    %v628 = vunpack.c.l.b16 %v99
    %v629 = vunpack.c.h.b16 %v99
    %v630 = vunpack.c.l.b16 %v100
    %v631 = vunpack.c.h.b16 %v100
    %v632 = vunpack.c.l.b16 %v101
    %v633 = vunpack.c.h.b16 %v101
    %v634 = vunpack.c.l.b16 %v102
    %v635 = vunpack.c.h.b16 %v102
    %v636 = vunpack.c.l.b16 %v103
    %v637 = vunpack.c.h.b16 %v103
    %v638 = vunpack.c.l.b16 %v104
    %v639 = vunpack.c.h.b16 %v104
    %v640 = vunpack.c.l.b16 %v105
    %v641 = vunpack.c.h.b16 %v105
    %v642 = vunpack.c.l.b16 %v106
    %v643 = vunpack.c.h.b16 %v106
    %v644 = vunpack.c.l.b16 %v107
    %v645 = vunpack.c.h.b16 %v107
    %v646 = vunpack.c.l.b16 %v108
    %v647 = vunpack.c.h.b16 %v108
    %v648 = vunpack.c.l.b16 %v109
    %v649 = vunpack.c.h.b16 %v109
    %v650 = vunpack.c.l.b16 %v110
    %v651 = vunpack.c.h.b16 %v110
    %v652 = vunpack.c.l.b16 %v111
    %v653 = vunpack.c.h.b16 %v111
    %v654 = vunpack.c.l.b16 %v112
    %v655 = vunpack.c.h.b16 %v112
    %v656 = vunpack.c.l.b16 %v113
    %v657 = vunpack.c.h.b16 %v113
    %v658 = vunpack.c.l.b16 %v114
    %v659 = vunpack.c.h.b16 %v114
    %v660 = vunpack.c.l.b16 %v115
    %v661 = vunpack.c.h.b16 %v115
    %v662 = vunpack.c.l.b16 %v116
    %v663 = vunpack.c.h.b16 %v116
    %v664 = vunpack.c.l.b16 %v117
    %v665 = vunpack.c.h.b16 %v117
    %v666 = vunpack.c.l.b16 %v118
    %v667 = vunpack.c.h.b16 %v118
    %v668 = vunpack.c.l.b16 %v119
    %v669 = vunpack.c.h.b16 %v119
    %v670 = vunpack.c.l.b16 %v120
    %v671 = vunpack.c.h.b16 %v120
    %v672 = vunpack.c.l.b16 %v121
    %v673 = vunpack.c.h.b16 %v121
    %v674 = vunpack.c.l.b16 %v122
    %v675 = vunpack.c.h.b16 %v122
    %v676 = vunpack.c.l.b16 %v123
    %v677 = vunpack.c.h.b16 %v123
    %v678 = vunpack.c.l.b16 %v124
    %v679 = vunpack.c.h.b16 %v124
    %v680 = vunpack.c.l.b16 %v125
    %v681 = vunpack.c.h.b16 %v125
    %v682 = vunpack.c.l.b16 %v126
    %v683 = vunpack.c.h.b16 %v126
    %v684 = vunpack.c.l.b16 %v127
    %v685 = vunpack.c.h.b16 %v127
    %v686 = vunpack.c.l.b16 %v128
    %v687 = vunpack.c.h.b16 %v128
    %v688 = vunpack.c.l.b16 %v129
    %v689 = vunpack.c.h.b16 %v129
    %v690 = vunpack.c.l.b16 %v130
    %v691 = vunpack.c.h.b16 %v130
    %v692 = vunpack.c.l.b16 %v131
    %v693 = vunpack.c.h.b16 %v131
    %v694 = vunpack.c.l.b16 %v132
    %v695 = vunpack.c.h.b16 %v132
    %v696 = vunpack.c.l.b16 %v133
    %v697 = vunpack.c.h.b16 %v133
    %v698 = vunpack.c.l.b16 %v134
    %v699 = vunpack.c.h.b16 %v134
    %v700 = vunpack.c.l.b16 %v135
    %v701 = vunpack.c.h.b16 %v135
    %v702 = vunpack.c.l.b16 %v136
    %v703 = vunpack.c.h.b16 %v136
    %v704 = vunpack.c.l.b16 %v137
    %v705 = vunpack.c.h.b16 %v137
    %v706 = vunpack.c.l.b16 %v138
    %v707 = vunpack.c.h.b16 %v138
    %v708 = vunpack.c.l.b16 %v139
    %v709 = vunpack.c.h.b16 %v139
    %v710 = vunpack.c.l.b16 %v140
    %v711 = vunpack.c.h.b16 %v140
    %v712 = vunpack.c.l.b16 %v141
    %v713 = vunpack.c.h.b16 %v141
    %v714 = vunpack.c.l.b16 %v142
    %v715 = vunpack.c.h.b16 %v142
    %v716 = vunpack.c.l.b16 %v143
    %v717 = vunpack.c.h.b16 %v143
    %v718 = vunpack.c.l.b16 %v144
    %v719 = vunpack.c.h.b16 %v144
    %v720 = vunpack.c.l.b16 %v145
    %v721 = vunpack.c.h.b16 %v145
    %v722 = vunpack.c.l.b16 %v146
    %v723 = vunpack.c.h.b16 %v146
    %v724 = vunpack.c.l.b16 %v147
    %v725 = vunpack.c.h.b16 %v147
    %v726 = vunpack.c.l.b16 %v148
    %v727 = vunpack.c.h.b16 %v148
    %v728 = vunpack.c.l.b16 %v149
    %v729 = vunpack.c.h.b16 %v149
    %v730 = vunpack.c.l.b16 %v150
    %v731 = vunpack.c.h.b16 %v150
    %v732 = vunpack.c.l.b16 %v151
    %v733 = vunpack.c.h.b16 %v151
    %v734 = vunpack.c.l.b16 %v152
    %v735 = vunpack.c.h.b16 %v152
    %v736 = vunpack.c.l.b16 %v153
    %v737 = vunpack.c.h.b16 %v153
    %v738 = vunpack.c.l.b16 %v154
    %v739 = vunpack.c.h.b16 %v154
    %v740 = vunpack.c.l.b16 %v155
    %v741 = vunpack.c.h.b16 %v155
    %v742 = vunpack.c.l.b16 %v156
    %v743 = vunpack.c.h.b16 %v156
    %v744 = vunpack.c.l.b16 %v157
    %v745 = vunpack.c.h.b16 %v157
    %v746 = vunpack.c.l.b16 %v158
    %v747 = vunpack.c.h.b16 %v158
    %v748 = vunpack.c.l.b16 %v159
    %v749 = vunpack.c.h.b16 %v159
    %v750 = vunpack.c.l.b16 %v160
    %v751 = vunpack.c.h.b16 %v160
    %v752 = vunpack.c.l.b16 %v161
    %v753 = vunpack.c.h.b16 %v161
    %v754 = vunpack.c.l.b16 %v162
    %v755 = vunpack.c.h.b16 %v162
    %v756 = vunpack.c.l.b16 %v163
    %v757 = vunpack.c.h.b16 %v163
    %v758 = vunpack.c.l.b16 %v164
    %v759 = vunpack.c.h.b16 %v164
    %v760 = vunpack.c.l.b16 %v165
    %v761 = vunpack.c.h.b16 %v165
    %v762 = vunpack.c.l.b16 %v166
    %v763 = vunpack.c.h.b16 %v166
    %v764 = vunpack.c.l.b16 %v167
    %v765 = vunpack.c.h.b16 %v167
    %v766 = vunpack.c.l.b16 %v168
    %v767 = vunpack.c.h.b16 %v168
    %v768 = vunpack.c.l.b16 %v169
    %v769 = vunpack.c.h.b16 %v169
    %v770 = vunpack.c.l.b16 %v170
    %v771 = vunpack.c.h.b16 %v170
    %v772 = vunpack.c.l.b16 %v171
    %v773 = vunpack.c.h.b16 %v171
    %v774 = vunpack.c.l.b16 %v172
    %v775 = vunpack.c.h.b16 %v172
    %v776 = vunpack.c.l.b16 %v173
    %v777 = vunpack.c.h.b16 %v173
    %v778 = vunpack.c.l.b16 %v174
    %v779 = vunpack.c.h.b16 %v174
    %v780 = vunpack.c.l.b16 %v175
    %v781 = vunpack.c.h.b16 %v175
    %v782 = vunpack.c.l.b16 %v176
    %v783 = vunpack.c.h.b16 %v176
    %v784 = vunpack.c.l.b16 %v177
    %v785 = vunpack.c.h.b16 %v177
    %v786 = vunpack.c.l.b16 %v178
    %v787 = vunpack.c.h.b16 %v178
    %v788 = vunpack.c.l.b16 %v179
    %v789 = vunpack.c.h.b16 %v179
    %v790 = vunpack.c.l.b16 %v180
    %v791 = vunpack.c.h.b16 %v180
    %v792 = vunpack.c.l.b16 %v181
    %v793 = vunpack.c.h.b16 %v181
    %v794 = vunpack.c.l.b16 %v182
    %v795 = vunpack.c.h.b16 %v182
    %v796 = vunpack.c.l.b16 %v183
    %v797 = vunpack.c.h.b16 %v183
    %v798 = vunpack.c.l.b16 %v184
    %v799 = vunpack.c.h.b16 %v184
    %v800 = vunpack.c.l.b16 %v185
    %v801 = vunpack.c.h.b16 %v185
    %v802 = vunpack.c.l.b16 %v186
    %v803 = vunpack.c.h.b16 %v186
    %v804 = vunpack.c.l.b16 %v187
    %v805 = vunpack.c.h.b16 %v187
    %v806 = vunpack.c.l.b16 %v188
    %v807 = vunpack.c.h.b16 %v188
    %v808 = vunpack.c.l.b16 %v189
    %v809 = vunpack.c.h.b16 %v189
    %v810 = vunpack.c.l.b16 %v190
    %v811 = vunpack.c.h.b16 %v190
    %v812 = vunpack.c.l.b16 %v191
    %v813 = vunpack.c.h.b16 %v191
    %v814 = vunpack.c.l.b16 %v192
    %v815 = vunpack.c.h.b16 %v192
    %v816 = vunpack.c.l.b16 %v193
    %v817 = vunpack.c.h.b16 %v193
    %v818 = vunpack.c.l.b16 %v194
    %v819 = vunpack.c.h.b16 %v194
    %v820 = vunpack.c.l.b16 %v195
    %v821 = vunpack.c.h.b16 %v195
    %v822 = vunpack.c.l.b16 %v196
    %v823 = vunpack.c.h.b16 %v196
    %v824 = vunpack.c.l.b16 %v197
    %v825 = vunpack.c.h.b16 %v197
    %v826 = vunpack.c.l.b16 %v198
    %v827 = vunpack.c.h.b16 %v198
    %v828 = vunpack.c.l.b16 %v199
    %v829 = vunpack.c.h.b16 %v199
    %v830 = vunpack.c.l.b16 %v200
    %v831 = vunpack.c.h.b16 %v200
    %v832 = vunpack.c.l.b16 %v201
    %v833 = vunpack.c.h.b16 %v201
    %v834 = vunpack.c.l.b16 %v202
    %v835 = vunpack.c.h.b16 %v202
    %v836 = vunpack.c.l.b16 %v203
    %v837 = vunpack.c.h.b16 %v203
    %v838 = vunpack.c.l.b16 %v204
    %v839 = vunpack.c.h.b16 %v204
    %v840 = vunpack.c.l.b16 %v205
    %v841 = vunpack.c.h.b16 %v205
    %v842 = vunpack.c.l.b16 %v206
    %v843 = vunpack.c.h.b16 %v206
    %v844 = vunpack.c.l.b16 %v207
    %v845 = vunpack.c.h.b16 %v207
    %v846 = vunpack.c.l.b16 %v208
    %v847 = vunpack.c.h.b16 %v208
    %v848 = vunpack.c.l.b16 %v209
    %v849 = vunpack.c.h.b16 %v209
    %v850 = vunpack.c.l.b16 %v210
    %v851 = vunpack.c.h.b16 %v210
    %v852 = vunpack.c.l.b16 %v211
    %v853 = vunpack.c.h.b16 %v211
    %v854 = vunpack.c.l.b16 %v212
    %v855 = vunpack.c.h.b16 %v212
    %v856 = vunpack.c.l.b16 %v213
    %v857 = vunpack.c.h.b16 %v213
    %v858 = vunpack.c.l.b16 %v214
    %v859 = vunpack.c.h.b16 %v214
    %v860 = vunpack.c.l.b16 %v215
    %v861 = vunpack.c.h.b16 %v215
    %v862 = vunpack.c.l.b16 %v216
    %v863 = vunpack.c.h.b16 %v216
    %v864 = vunpack.c.l.b16 %v217
    %v865 = vunpack.c.h.b16 %v217
    %v866 = vunpack.c.l.b16 %v218
    %v867 = vunpack.c.h.b16 %v218
    %v868 = vunpack.c.l.b16 %v219
    %v869 = vunpack.c.h.b16 %v219
    %v870 = vunpack.c.l.b16 %v220
    %v871 = vunpack.c.h.b16 %v220
    %v872 = vunpack.c.l.b16 %v221
    %v873 = vunpack.c.h.b16 %v221
    %v874 = vunpack.c.l.b16 %v222
    %v875 = vunpack.c.h.b16 %v222
    %v876 = vunpack.c.l.b16 %v223
    %v877 = vunpack.c.h.b16 %v223
    %v878 = vunpack.c.l.b16 %v224
    %v879 = vunpack.c.h.b16 %v224
    %v880 = vunpack.c.l.b16 %v225
    %v881 = vunpack.c.h.b16 %v225
    %v882 = vunpack.c.l.b16 %v226
    %v883 = vunpack.c.h.b16 %v226
    %v884 = vunpack.c.l.b16 %v227
    %v885 = vunpack.c.h.b16 %v227
    %v886 = vunpack.c.l.b16 %v228
    %v887 = vunpack.c.h.b16 %v228
    %v888 = vunpack.c.l.b16 %v229
    %v889 = vunpack.c.h.b16 %v229
    %v890 = vunpack.c.l.b16 %v230
    %v891 = vunpack.c.h.b16 %v230
    %v892 = vunpack.c.l.b16 %v231
    %v893 = vunpack.c.h.b16 %v231
    %v894 = vunpack.c.l.b16 %v232
    %v895 = vunpack.c.h.b16 %v232
    %v896 = vunpack.c.l.b16 %v233
    %v897 = vunpack.c.h.b16 %v233
    %v898 = vunpack.c.l.b16 %v234
    %v899 = vunpack.c.h.b16 %v234
    %v900 = vunpack.c.l.b16 %v235
    %v901 = vunpack.c.h.b16 %v235
    %v902 = vunpack.c.l.b16 %v236
    %v903 = vunpack.c.h.b16 %v236
    %v904 = vunpack.c.l.b16 %v237
    %v905 = vunpack.c.h.b16 %v237
    %v906 = vunpack.c.l.b16 %v238
    %v907 = vunpack.c.h.b16 %v238
    %v908 = vunpack.c.l.b16 %v239
    %v909 = vunpack.c.h.b16 %v239
    %v910 = vunpack.c.l.b16 %v240
    %v911 = vunpack.c.h.b16 %v240
    %v912 = vunpack.c.l.b16 %v241
    %v913 = vunpack.c.h.b16 %v241
    %v914 = vunpack.c.l.b16 %v242
    %v915 = vunpack.c.h.b16 %v242
    %v916 = vunpack.c.l.b16 %v243
    %v917 = vunpack.c.h.b16 %v243
    %v918 = vunpack.c.l.b16 %v244
    %v919 = vunpack.c.h.b16 %v244
    %v920 = vunpack.c.l.b16 %v245
    %v921 = vunpack.c.h.b16 %v245
    %v922 = vunpack.c.l.b16 %v246
    %v923 = vunpack.c.h.b16 %v246
    %v924 = vunpack.c.l.b16 %v247
    %v925 = vunpack.c.h.b16 %v247
    %v926 = vunpack.c.l.b16 %v248
    %v927 = vunpack.c.h.b16 %v248
    %v928 = vunpack.c.l.b16 %v249
    %v929 = vunpack.c.h.b16 %v249
    %v930 = vunpack.c.l.b16 %v250
    %v931 = vunpack.c.h.b16 %v250
    %v932 = vunpack.c.l.b16 %v251
    %v933 = vunpack.c.h.b16 %v251
    %v934 = vunpack.c.l.b16 %v252
    %v935 = vunpack.c.h.b16 %v252
    %v936 = vunpack.c.l.b16 %v253
    %v937 = vunpack.c.h.b16 %v253
    %v938 = vunpack.c.l.b16 %v254
    %v939 = vunpack.c.h.b16 %v254
    %v940 = vunpack.c.l.b16 %v255
    %v941 = vunpack.c.h.b16 %v255
    %v942 = vunpack.c.l.b16 %v256
    %v943 = vunpack.c.h.b16 %v256
    %v944 = vunpack.c.l.b16 %v257
    %v945 = vunpack.c.h.b16 %v257
    %v946 = vunpack.c.l.b16 %v258
    %v947 = vunpack.c.h.b16 %v258
    %v948 = vunpack.c.l.b16 %v259
    %v949 = vunpack.c.h.b16 %v259
    %v950 = vunpack.c.l.b16 %v260
    %v951 = vunpack.c.h.b16 %v260
    %v952 = vunpack.c.l.b16 %v261
    %v953 = vunpack.c.h.b16 %v261
    %v954 = vunpack.c.l.b16 %v262
    %v955 = vunpack.c.h.b16 %v262
    %v956 = vunpack.c.l.b16 %v263
    %v957 = vunpack.c.h.b16 %v263
    %v958 = vunpack.c.l.b16 %v264
    %v959 = vunpack.c.h.b16 %v264
    %v960 = vunpack.c.l.b16 %v265
    %v961 = vunpack.c.h.b16 %v265
    %v962 = vunpack.c.l.b16 %v266
    %v963 = vunpack.c.h.b16 %v266
    %v964 = vunpack.c.l.b16 %v267
    %v965 = vunpack.c.h.b16 %v267
    %v966 = vunpack.c.l.b16 %v268
    %v967 = vunpack.c.h.b16 %v268
    %v968 = vunpack.c.l.b16 %v269
    %v969 = vunpack.c.h.b16 %v269
    %v970 = vunpack.c.l.b16 %v270
    %v971 = vunpack.c.h.b16 %v270
    %v972 = vunpack.c.l.b16 %v271
    %v973 = vunpack.c.h.b16 %v271
    %v974 = vunpack.c.l.b16 %v272
    %v975 = vunpack.c.h.b16 %v272
    %v976 = vunpack.c.l.b16 %v273
    %v977 = vunpack.c.h.b16 %v273
    %v978 = vunpack.c.l.b16 %v274
    %v979 = vunpack.c.h.b16 %v274
    %v980 = vunpack.c.l.b16 %v275
    %v981 = vunpack.c.h.b16 %v275
    %v982 = vpack.c.b16 %v602, %v598
    %v983 = vpack.c.b16 %v603, %v599
    %v984 = vpack.c.b16 %v604, %v600
    %v985 = vpack.c.b16 %v605, %v601
    %v986 = vpack.c.b16 %v610, %v606
    %v987 = vpack.c.b16 %v611, %v607
    %v988 = vpack.c.b16 %v612, %v608
    %v989 = vpack.c.b16 %v613, %v609
    %v990 = vpack.c.b16 %v618, %v614
    %v991 = vpack.c.b16 %v619, %v615
    %v992 = vpack.c.b16 %v620, %v616
    %v993 = vpack.c.b16 %v621, %v617
    %v994 = vpack.c.b16 %v626, %v622
    %v995 = vpack.c.b16 %v627, %v623
    %v996 = vpack.c.b16 %v628, %v624
    %v997 = vpack.c.b16 %v629, %v625
    %v998 = vpack.c.b16 %v634, %v630
    %v999 = vpack.c.b16 %v635, %v631
    %v1000 = vpack.c.b16 %v636, %v632
    %v1001 = vpack.c.b16 %v637, %v633
    %v1002 = vpack.c.b16 %v642, %v638
    %v1003 = vpack.c.b16 %v643, %v639
    %v1004 = vpack.c.b16 %v644, %v640
    %v1005 = vpack.c.b16 %v645, %v641
    %v1006 = vpack.c.b16 %v650, %v646
    %v1007 = vpack.c.b16 %v651, %v647
    %v1008 = vpack.c.b16 %v652, %v648
    %v1009 = vpack.c.b16 %v653, %v649
    %v1010 = vpack.c.b16 %v658, %v654
    %v1011 = vpack.c.b16 %v659, %v655
    %v1012 = vpack.c.b16 %v660, %v656
    %v1013 = vpack.c.b16 %v661, %v657
    %v1014 = vpack.c.b16 %v666, %v662
    %v1015 = vpack.c.b16 %v667, %v663
    %v1016 = vpack.c.b16 %v668, %v664
    %v1017 = vpack.c.b16 %v669, %v665
    %v1018 = vpack.c.b16 %v674, %v670
    %v1019 = vpack.c.b16 %v675, %v671
    %v1020 = vpack.c.b16 %v676, %v672
    %v1021 = vpack.c.b16 %v677, %v673
    %v1022 = vpack.c.b16 %v682, %v678
    %v1023 = vpack.c.b16 %v683, %v679
    %v1024 = vpack.c.b16 %v684, %v680
    %v1025 = vpack.c.b16 %v685, %v681
    %v1026 = vpack.c.b16 %v690, %v686
    %v1027 = vpack.c.b16 %v691, %v687
    %v1028 = vpack.c.b16 %v692, %v688
    %v1029 = vpack.c.b16 %v693, %v689
    %v1030 = vpack.c.b16 %v698, %v694
    %v1031 = vpack.c.b16 %v699, %v695
    %v1032 = vpack.c.b16 %v700, %v696
    %v1033 = vpack.c.b16 %v701, %v697
    %v1034 = vpack.c.b16 %v706, %v702
    %v1035 = vpack.c.b16 %v707, %v703
    %v1036 = vpack.c.b16 %v708, %v704
    %v1037 = vpack.c.b16 %v709, %v705
    %v1038 = vpack.c.b16 %v714, %v710
    %v1039 = vpack.c.b16 %v715, %v711
    %v1040 = vpack.c.b16 %v716, %v712
    %v1041 = vpack.c.b16 %v717, %v713
    %v1042 = vpack.c.b16 %v722, %v718
    %v1043 = vpack.c.b16 %v723, %v719
    %v1044 = vpack.c.b16 %v724, %v720
    %v1045 = vpack.c.b16 %v725, %v721
    %v1046 = vpack.c.b16 %v730, %v726
    %v1047 = vpack.c.b16 %v731, %v727
    %v1048 = vpack.c.b16 %v732, %v728
    %v1049 = vpack.c.b16 %v733, %v729
    %v1050 = vpack.c.b16 %v738, %v734
    %v1051 = vpack.c.b16 %v739, %v735
    %v1052 = vpack.c.b16 %v740, %v736
    %v1053 = vpack.c.b16 %v741, %v737
    %v1054 = vpack.c.b16 %v746, %v742
    %v1055 = vpack.c.b16 %v747, %v743
    %v1056 = vpack.c.b16 %v748, %v744
    %v1057 = vpack.c.b16 %v749, %v745
    %v1058 = vpack.c.b16 %v754, %v750
    %v1059 = vpack.c.b16 %v755, %v751
    %v1060 = vpack.c.b16 %v756, %v752
    %v1061 = vpack.c.b16 %v757, %v753
    %v1062 = vpack.c.b16 %v762, %v758
    %v1063 = vpack.c.b16 %v763, %v759
    %v1064 = vpack.c.b16 %v764, %v760
    %v1065 = vpack.c.b16 %v765, %v761
    %v1066 = vpack.c.b16 %v770, %v766
    %v1067 = vpack.c.b16 %v771, %v767
    %v1068 = vpack.c.b16 %v772, %v768
    %v1069 = vpack.c.b16 %v773, %v769
    %v1070 = vpack.c.b16 %v778, %v774
    %v1071 = vpack.c.b16 %v779, %v775
    %v1072 = vpack.c.b16 %v780, %v776
    %v1073 = vpack.c.b16 %v781, %v777
    %v1074 = vpack.c.b16 %v786, %v782
    %v1075 = vpack.c.b16 %v787, %v783
    %v1076 = vpack.c.b16 %v788, %v784
    %v1077 = vpack.c.b16 %v789, %v785
    %v1078 = vpack.c.b16 %v794, %v790
    %v1079 = vpack.c.b16 %v795, %v791
    %v1080 = vpack.c.b16 %v796, %v792
    %v1081 = vpack.c.b16 %v797, %v793
    %v1082 = vpack.c.b16 %v802, %v798
    %v1083 = vpack.c.b16 %v803, %v799
    %v1084 = vpack.c.b16 %v804, %v800
    %v1085 = vpack.c.b16 %v805, %v801
    %v1086 = vpack.c.b16 %v810, %v806
    %v1087 = vpack.c.b16 %v811, %v807
    %v1088 = vpack.c.b16 %v812, %v808
    %v1089 = vpack.c.b16 %v813, %v809
    %v1090 = vpack.c.b16 %v818, %v814
    %v1091 = vpack.c.b16 %v819, %v815
    %v1092 = vpack.c.b16 %v820, %v816
    %v1093 = vpack.c.b16 %v821, %v817
    %v1094 = vpack.c.b16 %v826, %v822
    %v1095 = vpack.c.b16 %v827, %v823
    %v1096 = vpack.c.b16 %v828, %v824
    %v1097 = vpack.c.b16 %v829, %v825
    %v1098 = vpack.c.b16 %v834, %v830
    %v1099 = vpack.c.b16 %v835, %v831
    %v1100 = vpack.c.b16 %v836, %v832
    %v1101 = vpack.c.b16 %v837, %v833
    %v1102 = vpack.c.b16 %v842, %v838
    %v1103 = vpack.c.b16 %v843, %v839
    %v1104 = vpack.c.b16 %v844, %v840
    %v1105 = vpack.c.b16 %v845, %v841
    %v1106 = vpack.c.b16 %v850, %v846
    %v1107 = vpack.c.b16 %v851, %v847
    %v1108 = vpack.c.b16 %v852, %v848
    %v1109 = vpack.c.b16 %v853, %v849
    %v1110 = vpack.c.b16 %v858, %v854
    %v1111 = vpack.c.b16 %v859, %v855
    %v1112 = vpack.c.b16 %v860, %v856
    %v1113 = vpack.c.b16 %v861, %v857
    %v1114 = vpack.c.b16 %v866, %v862
    %v1115 = vpack.c.b16 %v867, %v863
    %v1116 = vpack.c.b16 %v868, %v864
    %v1117 = vpack.c.b16 %v869, %v865
    %v1118 = vpack.c.b16 %v874, %v870
    %v1119 = vpack.c.b16 %v875, %v871
    %v1120 = vpack.c.b16 %v876, %v872
    %v1121 = vpack.c.b16 %v877, %v873
    %v1122 = vpack.c.b16 %v882, %v878
    %v1123 = vpack.c.b16 %v883, %v879
    %v1124 = vpack.c.b16 %v884, %v880
    %v1125 = vpack.c.b16 %v885, %v881
    %v1126 = vpack.c.b16 %v890, %v886
    %v1127 = vpack.c.b16 %v891, %v887
    %v1128 = vpack.c.b16 %v892, %v888
    %v1129 = vpack.c.b16 %v893, %v889
    %v1130 = vpack.c.b16 %v898, %v894
    %v1131 = vpack.c.b16 %v899, %v895
    %v1132 = vpack.c.b16 %v900, %v896
    %v1133 = vpack.c.b16 %v901, %v897
    %v1134 = vpack.c.b16 %v906, %v902
    %v1135 = vpack.c.b16 %v907, %v903
    %v1136 = vpack.c.b16 %v908, %v904
    %v1137 = vpack.c.b16 %v909, %v905
    %v1138 = vpack.c.b16 %v914, %v910
    %v1139 = vpack.c.b16 %v915, %v911
    %v1140 = vpack.c.b16 %v916, %v912
    %v1141 = vpack.c.b16 %v917, %v913
    %v1142 = vpack.c.b16 %v922, %v918
    %v1143 = vpack.c.b16 %v923, %v919
    %v1144 = vpack.c.b16 %v924, %v920
    %v1145 = vpack.c.b16 %v925, %v921
    %v1146 = vpack.c.b16 %v930, %v926
    %v1147 = vpack.c.b16 %v931, %v927
    %v1148 = vpack.c.b16 %v932, %v928
    %v1149 = vpack.c.b16 %v933, %v929
    %v1150 = vpack.c.b16 %v938, %v934
    %v1151 = vpack.c.b16 %v939, %v935
    %v1152 = vpack.c.b16 %v940, %v936
    %v1153 = vpack.c.b16 %v941, %v937
    %v1154 = vpack.c.b16 %v946, %v942
    %v1155 = vpack.c.b16 %v947, %v943
    %v1156 = vpack.c.b16 %v948, %v944
    %v1157 = vpack.c.b16 %v949, %v945
    %v1158 = vpack.c.b16 %v954, %v950
    %v1159 = vpack.c.b16 %v955, %v951
    %v1160 = vpack.c.b16 %v956, %v952
    %v1161 = vpack.c.b16 %v957, %v953
    %v1162 = vpack.c.b16 %v962, %v958
    %v1163 = vpack.c.b16 %v963, %v959
    %v1164 = vpack.c.b16 %v964, %v960
    %v1165 = vpack.c.b16 %v965, %v961
    %v1166 = vpack.c.b16 %v970, %v966
    %v1167 = vpack.c.b16 %v971, %v967
    %v1168 = vpack.c.b16 %v972, %v968
    %v1169 = vpack.c.b16 %v973, %v969
    %v1170 = vpack.c.b16 %v978, %v974
    %v1171 = vpack.c.b16 %v979, %v975
    %v1172 = vpack.c.b16 %v980, %v976
    %v1173 = vpack.c.b16 %v981, %v977
    %1366 = vmatpush.bf16.msra.mxu0 %v1010
    %1367 = vmatpush.bf16.msra.mxu0 %v1006
    %1368 = vmatpush.bf16.msra.mxu0 %v1002
    %1369 = vmatpush.bf16.msra.mxu0 %v998
    %1370 = vmatpush.bf16.msra.mxu0 %v994
    %1371 = vmatpush.bf16.msra.mxu0 %v990
    %1372 = vmatpush.bf16.msra.mxu0 %v986
    %1373 = vmatpush.bf16.msra.mxu0 %v982
    %1374 = vmatmul.bf16.gmra.mxu0 %v358
    %v1375 = vpop.f32.mrf.mxu0
    %v1376 = vadd.f32 %v278, %v1375
    %v1377 = vpop.f32.mrf.mxu0
    %v1378 = vadd.f32 %v278, %v1377
    %1379 = vmatmul.bf16.gmra.mxu0 %v364
    %v1380 = vpop.f32.mrf.mxu0
    %v1381 = vadd.f32 %v278, %v1380
    %v1382 = vpop.f32.mrf.mxu0
    %v1383 = vadd.f32 %v278, %v1382
    %1384 = vmatmul.bf16.gmra.mxu0 %v370
    %v1385 = vpop.f32.mrf.mxu0
    %v1386 = vadd.f32 %v278, %v1385
    %v1387 = vpop.f32.mrf.mxu0
    %v1388 = vadd.f32 %v278, %v1387
    %1389 = vmatmul.bf16.gmra.mxu0 %v376
    %v1390 = vpop.f32.mrf.mxu0
    %v1391 = vadd.f32 %v278, %v1390
    %v1392 = vpop.f32.mrf.mxu0
    %v1393 = vadd.f32 %v278, %v1392
    %1394 = vdwg.mxu0
    %1395 = vmatpush.bf16.msra.mxu0 %v1042
    %1396 = vmatpush.bf16.msra.mxu0 %v1038
    %1397 = vmatpush.bf16.msra.mxu0 %v1034
    %1398 = vmatpush.bf16.msra.mxu0 %v1030
    %1399 = vmatpush.bf16.msra.mxu0 %v1026
    %1400 = vmatpush.bf16.msra.mxu0 %v1022
    %1401 = vmatpush.bf16.msra.mxu0 %v1018
    %1402 = vmatpush.bf16.msra.mxu0 %v1014
    %1403 = vmatmul.bf16.gmra.mxu0 %v359
    %v1404 = vpop.f32.mrf.mxu0
    %v1405 = vadd.f32 %v1376, %v1404
    %v1406 = vpop.f32.mrf.mxu0
    %v1407 = vadd.f32 %v1378, %v1406
    %1408 = vmatmul.bf16.gmra.mxu0 %v365
    %v1409 = vpop.f32.mrf.mxu0
    %v1410 = vadd.f32 %v1381, %v1409
    %v1411 = vpop.f32.mrf.mxu0
    %v1412 = vadd.f32 %v1383, %v1411
    %1413 = vmatmul.bf16.gmra.mxu0 %v371
    %v1414 = vpop.f32.mrf.mxu0
    %v1415 = vadd.f32 %v1386, %v1414
    %v1416 = vpop.f32.mrf.mxu0
    %v1417 = vadd.f32 %v1388, %v1416
    %1418 = vmatmul.bf16.gmra.mxu0 %v377
    %v1419 = vpop.f32.mrf.mxu0
    %v1420 = vadd.f32 %v1391, %v1419
    %v1421 = vpop.f32.mrf.mxu0
    %v1422 = vadd.f32 %v1393, %v1421
    %1423 = vdwg.mxu0
    %1424 = vmatpush.bf16.msra.mxu0 %v1074
    %1425 = vmatpush.bf16.msra.mxu0 %v1070
    %1426 = vmatpush.bf16.msra.mxu0 %v1066
    %1427 = vmatpush.bf16.msra.mxu0 %v1062
    %1428 = vmatpush.bf16.msra.mxu0 %v1058
    %1429 = vmatpush.bf16.msra.mxu0 %v1054
    %1430 = vmatpush.bf16.msra.mxu0 %v1050
    %1431 = vmatpush.bf16.msra.mxu0 %v1046
    %1432 = vmatmul.bf16.gmra.mxu0 %v360
    %v1433 = vpop.f32.mrf.mxu0
    %v1434 = vadd.f32 %v1405, %v1433
    %v1435 = vpop.f32.mrf.mxu0
    %v1436 = vadd.f32 %v1407, %v1435
    %1437 = vmatmul.bf16.gmra.mxu0 %v366
    %v1438 = vpop.f32.mrf.mxu0
    %v1439 = vadd.f32 %v1410, %v1438
    %v1440 = vpop.f32.mrf.mxu0
    %v1441 = vadd.f32 %v1412, %v1440
    %1442 = vmatmul.bf16.gmra.mxu0 %v372
    %v1443 = vpop.f32.mrf.mxu0
    %v1444 = vadd.f32 %v1415, %v1443
    %v1445 = vpop.f32.mrf.mxu0
    %v1446 = vadd.f32 %v1417, %v1445
    %1447 = vmatmul.bf16.gmra.mxu0 %v378
    %v1448 = vpop.f32.mrf.mxu0
    %v1449 = vadd.f32 %v1420, %v1448
    %v1450 = vpop.f32.mrf.mxu0
    %v1451 = vadd.f32 %v1422, %v1450
    %1452 = vdwg.mxu0
    %1453 = vmatpush.bf16.msra.mxu0 %v1106
    %1454 = vmatpush.bf16.msra.mxu0 %v1102
    %1455 = vmatpush.bf16.msra.mxu0 %v1098
    %1456 = vmatpush.bf16.msra.mxu0 %v1094
    %1457 = vmatpush.bf16.msra.mxu0 %v1090
    %1458 = vmatpush.bf16.msra.mxu0 %v1086
    %1459 = vmatpush.bf16.msra.mxu0 %v1082
    %1460 = vmatpush.bf16.msra.mxu0 %v1078
    %1461 = vmatmul.bf16.gmra.mxu0 %v361
    %v1462 = vpop.f32.mrf.mxu0
    %v1463 = vadd.f32 %v1434, %v1462
    %v1464 = vpop.f32.mrf.mxu0
    %v1465 = vadd.f32 %v1436, %v1464
    %1466 = vmatmul.bf16.gmra.mxu0 %v367
    %v1467 = vpop.f32.mrf.mxu0
    %v1468 = vadd.f32 %v1439, %v1467
    %v1469 = vpop.f32.mrf.mxu0
    %v1470 = vadd.f32 %v1441, %v1469
    %1471 = vmatmul.bf16.gmra.mxu0 %v373
    %v1472 = vpop.f32.mrf.mxu0
    %v1473 = vadd.f32 %v1444, %v1472
    %v1474 = vpop.f32.mrf.mxu0
    %v1475 = vadd.f32 %v1446, %v1474
    %1476 = vmatmul.bf16.gmra.mxu0 %v379
    %v1477 = vpop.f32.mrf.mxu0
    %v1478 = vadd.f32 %v1449, %v1477
    %v1479 = vpop.f32.mrf.mxu0
    %v1480 = vadd.f32 %v1451, %v1479
    %1481 = vdwg.mxu0
    %1482 = vmatpush.bf16.msra.mxu0 %v1138
    %1483 = vmatpush.bf16.msra.mxu0 %v1134
    %1484 = vmatpush.bf16.msra.mxu0 %v1130
    %1485 = vmatpush.bf16.msra.mxu0 %v1126
    %1486 = vmatpush.bf16.msra.mxu0 %v1122
    %1487 = vmatpush.bf16.msra.mxu0 %v1118
    %1488 = vmatpush.bf16.msra.mxu0 %v1114
    %1489 = vmatpush.bf16.msra.mxu0 %v1110
    %1490 = vmatmul.bf16.gmra.mxu0 %v362
    %v1491 = vpop.f32.mrf.mxu0
    %v1492 = vadd.f32 %v1463, %v1491
    %v1493 = vpop.f32.mrf.mxu0
    %v1494 = vadd.f32 %v1465, %v1493
    %1495 = vmatmul.bf16.gmra.mxu0 %v368
    %v1496 = vpop.f32.mrf.mxu0
    %v1497 = vadd.f32 %v1468, %v1496
    %v1498 = vpop.f32.mrf.mxu0
    %v1499 = vadd.f32 %v1470, %v1498
    %1500 = vmatmul.bf16.gmra.mxu0 %v374
    %v1501 = vpop.f32.mrf.mxu0
    %v1502 = vadd.f32 %v1473, %v1501
    %v1503 = vpop.f32.mrf.mxu0
    %v1504 = vadd.f32 %v1475, %v1503
    %1505 = vmatmul.bf16.gmra.mxu0 %v380
    %v1506 = vpop.f32.mrf.mxu0
    %v1507 = vadd.f32 %v1478, %v1506
    %v1508 = vpop.f32.mrf.mxu0
    %v1509 = vadd.f32 %v1480, %v1508
    %1510 = vdwg.mxu0
    %1511 = vmatpush.bf16.msra.mxu0 %v1170
    %1512 = vmatpush.bf16.msra.mxu0 %v1166
    %1513 = vmatpush.bf16.msra.mxu0 %v1162
    %1514 = vmatpush.bf16.msra.mxu0 %v1158
    %1515 = vmatpush.bf16.msra.mxu0 %v1154
    %1516 = vmatpush.bf16.msra.mxu0 %v1150
    %1517 = vmatpush.bf16.msra.mxu0 %v1146
    %1518 = vmatpush.bf16.msra.mxu0 %v1142
    %1519 = vmatmul.bf16.gmra.mxu0 %v363
    %v1520 = vpop.f32.mrf.mxu0
    %v1521 = vadd.f32 %v1492, %v1520
    %v1522 = vpop.f32.mrf.mxu0
    %v1523 = vadd.f32 %v1494, %v1522
    %1524 = vmatmul.bf16.gmra.mxu0 %v369
    %v1525 = vpop.f32.mrf.mxu0
    %v1526 = vadd.f32 %v1497, %v1525
    %v1527 = vpop.f32.mrf.mxu0
    %v1528 = vadd.f32 %v1499, %v1527
    %1529 = vmatmul.bf16.gmra.mxu0 %v375
    %v1530 = vpop.f32.mrf.mxu0
    %v1531 = vadd.f32 %v1502, %v1530
    %v1532 = vpop.f32.mrf.mxu0
    %v1533 = vadd.f32 %v1504, %v1532
    %1534 = vmatmul.bf16.gmra.mxu0 %v381
    %v1535 = vpop.f32.mrf.mxu0
    %v1536 = vadd.f32 %v1507, %v1535
    %v1537 = vpop.f32.mrf.mxu0
    %v1538 = vadd.f32 %v1509, %v1537
    %1539 = vdwg.mxu0
    %1540 = vmatpush.bf16.msra.mxu0 %v1011
    %1541 = vmatpush.bf16.msra.mxu0 %v1007
    %1542 = vmatpush.bf16.msra.mxu0 %v1003
    %1543 = vmatpush.bf16.msra.mxu0 %v999
    %1544 = vmatpush.bf16.msra.mxu0 %v995
    %1545 = vmatpush.bf16.msra.mxu0 %v991
    %1546 = vmatpush.bf16.msra.mxu0 %v987
    %1547 = vmatpush.bf16.msra.mxu0 %v983
    %1548 = vmatmul.bf16.gmra.mxu0 %v358
    %v1549 = vpop.f32.mrf.mxu0
    %v1550 = vadd.f32 %v279, %v1549
    %v1551 = vpop.f32.mrf.mxu0
    %v1552 = vadd.f32 %v279, %v1551
    %1553 = vmatmul.bf16.gmra.mxu0 %v364
    %v1554 = vpop.f32.mrf.mxu0
    %v1555 = vadd.f32 %v279, %v1554
    %v1556 = vpop.f32.mrf.mxu0
    %v1557 = vadd.f32 %v279, %v1556
    %1558 = vmatmul.bf16.gmra.mxu0 %v370
    %v1559 = vpop.f32.mrf.mxu0
    %v1560 = vadd.f32 %v279, %v1559
    %v1561 = vpop.f32.mrf.mxu0
    %v1562 = vadd.f32 %v279, %v1561
    %1563 = vmatmul.bf16.gmra.mxu0 %v376
    %v1564 = vpop.f32.mrf.mxu0
    %v1565 = vadd.f32 %v279, %v1564
    %v1566 = vpop.f32.mrf.mxu0
    %v1567 = vadd.f32 %v279, %v1566
    %1568 = vdwg.mxu0
    %1569 = vmatpush.bf16.msra.mxu0 %v1043
    %1570 = vmatpush.bf16.msra.mxu0 %v1039
    %1571 = vmatpush.bf16.msra.mxu0 %v1035
    %1572 = vmatpush.bf16.msra.mxu0 %v1031
    %1573 = vmatpush.bf16.msra.mxu0 %v1027
    %1574 = vmatpush.bf16.msra.mxu0 %v1023
    %1575 = vmatpush.bf16.msra.mxu0 %v1019
    %1576 = vmatpush.bf16.msra.mxu0 %v1015
    %1577 = vmatmul.bf16.gmra.mxu0 %v359
    %v1578 = vpop.f32.mrf.mxu0
    %v1579 = vadd.f32 %v1550, %v1578
    %v1580 = vpop.f32.mrf.mxu0
    %v1581 = vadd.f32 %v1552, %v1580
    %1582 = vmatmul.bf16.gmra.mxu0 %v365
    %v1583 = vpop.f32.mrf.mxu0
    %v1584 = vadd.f32 %v1555, %v1583
    %v1585 = vpop.f32.mrf.mxu0
    %v1586 = vadd.f32 %v1557, %v1585
    %1587 = vmatmul.bf16.gmra.mxu0 %v371
    %v1588 = vpop.f32.mrf.mxu0
    %v1589 = vadd.f32 %v1560, %v1588
    %v1590 = vpop.f32.mrf.mxu0
    %v1591 = vadd.f32 %v1562, %v1590
    %1592 = vmatmul.bf16.gmra.mxu0 %v377
    %v1593 = vpop.f32.mrf.mxu0
    %v1594 = vadd.f32 %v1565, %v1593
    %v1595 = vpop.f32.mrf.mxu0
    %v1596 = vadd.f32 %v1567, %v1595
    %1597 = vdwg.mxu0
    %1598 = vmatpush.bf16.msra.mxu0 %v1075
    %1599 = vmatpush.bf16.msra.mxu0 %v1071
    %1600 = vmatpush.bf16.msra.mxu0 %v1067
    %1601 = vmatpush.bf16.msra.mxu0 %v1063
    %1602 = vmatpush.bf16.msra.mxu0 %v1059
    %1603 = vmatpush.bf16.msra.mxu0 %v1055
    %1604 = vmatpush.bf16.msra.mxu0 %v1051
    %1605 = vmatpush.bf16.msra.mxu0 %v1047
    %1606 = vmatmul.bf16.gmra.mxu0 %v360
    %v1607 = vpop.f32.mrf.mxu0
    %v1608 = vadd.f32 %v1579, %v1607
    %v1609 = vpop.f32.mrf.mxu0
    %v1610 = vadd.f32 %v1581, %v1609
    %1611 = vmatmul.bf16.gmra.mxu0 %v366
    %v1612 = vpop.f32.mrf.mxu0
    %v1613 = vadd.f32 %v1584, %v1612
    %v1614 = vpop.f32.mrf.mxu0
    %v1615 = vadd.f32 %v1586, %v1614
    %1616 = vmatmul.bf16.gmra.mxu0 %v372
    %v1617 = vpop.f32.mrf.mxu0
    %v1618 = vadd.f32 %v1589, %v1617
    %v1619 = vpop.f32.mrf.mxu0
    %v1620 = vadd.f32 %v1591, %v1619
    %1621 = vmatmul.bf16.gmra.mxu0 %v378
    %v1622 = vpop.f32.mrf.mxu0
    %v1623 = vadd.f32 %v1594, %v1622
    %v1624 = vpop.f32.mrf.mxu0
    %v1625 = vadd.f32 %v1596, %v1624
    %1626 = vdwg.mxu0
    %1627 = vmatpush.bf16.msra.mxu0 %v1107
    %1628 = vmatpush.bf16.msra.mxu0 %v1103
    %1629 = vmatpush.bf16.msra.mxu0 %v1099
    %1630 = vmatpush.bf16.msra.mxu0 %v1095
    %1631 = vmatpush.bf16.msra.mxu0 %v1091
    %1632 = vmatpush.bf16.msra.mxu0 %v1087
    %1633 = vmatpush.bf16.msra.mxu0 %v1083
    %1634 = vmatpush.bf16.msra.mxu0 %v1079
    %1635 = vmatmul.bf16.gmra.mxu0 %v361
    %v1636 = vpop.f32.mrf.mxu0
    %v1637 = vadd.f32 %v1608, %v1636
    %v1638 = vpop.f32.mrf.mxu0
    %v1639 = vadd.f32 %v1610, %v1638
    %1640 = vmatmul.bf16.gmra.mxu0 %v367
    %v1641 = vpop.f32.mrf.mxu0
    %v1642 = vadd.f32 %v1613, %v1641
    %v1643 = vpop.f32.mrf.mxu0
    %v1644 = vadd.f32 %v1615, %v1643
    %1645 = vmatmul.bf16.gmra.mxu0 %v373
    %v1646 = vpop.f32.mrf.mxu0
    %v1647 = vadd.f32 %v1618, %v1646
    %v1648 = vpop.f32.mrf.mxu0
    %v1649 = vadd.f32 %v1620, %v1648
    %1650 = vmatmul.bf16.gmra.mxu0 %v379
    %v1651 = vpop.f32.mrf.mxu0
    %v1652 = vadd.f32 %v1623, %v1651
    %v1653 = vpop.f32.mrf.mxu0
    %v1654 = vadd.f32 %v1625, %v1653
    %1655 = vdwg.mxu0
    %1656 = vmatpush.bf16.msra.mxu0 %v1139
    %1657 = vmatpush.bf16.msra.mxu0 %v1135
    %1658 = vmatpush.bf16.msra.mxu0 %v1131
    %1659 = vmatpush.bf16.msra.mxu0 %v1127
    %1660 = vmatpush.bf16.msra.mxu0 %v1123
    %1661 = vmatpush.bf16.msra.mxu0 %v1119
    %1662 = vmatpush.bf16.msra.mxu0 %v1115
    %1663 = vmatpush.bf16.msra.mxu0 %v1111
    %1664 = vmatmul.bf16.gmra.mxu0 %v362
    %v1665 = vpop.f32.mrf.mxu0
    %v1666 = vadd.f32 %v1637, %v1665
    %v1667 = vpop.f32.mrf.mxu0
    %v1668 = vadd.f32 %v1639, %v1667
    %1669 = vmatmul.bf16.gmra.mxu0 %v368
    %v1670 = vpop.f32.mrf.mxu0
    %v1671 = vadd.f32 %v1642, %v1670
    %v1672 = vpop.f32.mrf.mxu0
    %v1673 = vadd.f32 %v1644, %v1672
    %1674 = vmatmul.bf16.gmra.mxu0 %v374
    %v1675 = vpop.f32.mrf.mxu0
    %v1676 = vadd.f32 %v1647, %v1675
    %v1677 = vpop.f32.mrf.mxu0
    %v1678 = vadd.f32 %v1649, %v1677
    %1679 = vmatmul.bf16.gmra.mxu0 %v380
    %v1680 = vpop.f32.mrf.mxu0
    %v1681 = vadd.f32 %v1652, %v1680
    %v1682 = vpop.f32.mrf.mxu0
    %v1683 = vadd.f32 %v1654, %v1682
    %1684 = vdwg.mxu0
    %1685 = vmatpush.bf16.msra.mxu0 %v1171
    %1686 = vmatpush.bf16.msra.mxu0 %v1167
    %1687 = vmatpush.bf16.msra.mxu0 %v1163
    %1688 = vmatpush.bf16.msra.mxu0 %v1159
    %1689 = vmatpush.bf16.msra.mxu0 %v1155
    %1690 = vmatpush.bf16.msra.mxu0 %v1151
    %1691 = vmatpush.bf16.msra.mxu0 %v1147
    %1692 = vmatpush.bf16.msra.mxu0 %v1143
    %1693 = vmatmul.bf16.gmra.mxu0 %v363
    %v1694 = vpop.f32.mrf.mxu0
    %v1695 = vadd.f32 %v1666, %v1694
    %v1696 = vpop.f32.mrf.mxu0
    %v1697 = vadd.f32 %v1668, %v1696
    %1698 = vmatmul.bf16.gmra.mxu0 %v369
    %v1699 = vpop.f32.mrf.mxu0
    %v1700 = vadd.f32 %v1671, %v1699
    %v1701 = vpop.f32.mrf.mxu0
    %v1702 = vadd.f32 %v1673, %v1701
    %1703 = vmatmul.bf16.gmra.mxu0 %v375
    %v1704 = vpop.f32.mrf.mxu0
    %v1705 = vadd.f32 %v1676, %v1704
    %v1706 = vpop.f32.mrf.mxu0
    %v1707 = vadd.f32 %v1678, %v1706
    %1708 = vmatmul.bf16.gmra.mxu0 %v381
    %v1709 = vpop.f32.mrf.mxu0
    %v1710 = vadd.f32 %v1681, %v1709
    %v1711 = vpop.f32.mrf.mxu0
    %v1712 = vadd.f32 %v1683, %v1711
    %1713 = vdwg.mxu0
    %1714 = vmatpush.bf16.msra.mxu0 %v1012
    %1715 = vmatpush.bf16.msra.mxu0 %v1008
    %1716 = vmatpush.bf16.msra.mxu0 %v1004
    %1717 = vmatpush.bf16.msra.mxu0 %v1000
    %1718 = vmatpush.bf16.msra.mxu0 %v996
    %1719 = vmatpush.bf16.msra.mxu0 %v992
    %1720 = vmatpush.bf16.msra.mxu0 %v988
    %1721 = vmatpush.bf16.msra.mxu0 %v984
    %1722 = vmatmul.bf16.gmra.mxu0 %v358
    %v1723 = vpop.f32.mrf.mxu0
    %v1724 = vadd.f32 %v280, %v1723
    %v1725 = vpop.f32.mrf.mxu0
    %v1726 = vadd.f32 %v280, %v1725
    %1727 = vmatmul.bf16.gmra.mxu0 %v364
    %v1728 = vpop.f32.mrf.mxu0
    %v1729 = vadd.f32 %v280, %v1728
    %v1730 = vpop.f32.mrf.mxu0
    %v1731 = vadd.f32 %v280, %v1730
    %1732 = vmatmul.bf16.gmra.mxu0 %v370
    %v1733 = vpop.f32.mrf.mxu0
    %v1734 = vadd.f32 %v280, %v1733
    %v1735 = vpop.f32.mrf.mxu0
    %v1736 = vadd.f32 %v280, %v1735
    %1737 = vmatmul.bf16.gmra.mxu0 %v376
    %v1738 = vpop.f32.mrf.mxu0
    %v1739 = vadd.f32 %v280, %v1738
    %v1740 = vpop.f32.mrf.mxu0
    %v1741 = vadd.f32 %v280, %v1740
    %1742 = vdwg.mxu0
    %1743 = vmatpush.bf16.msra.mxu0 %v1044
    %1744 = vmatpush.bf16.msra.mxu0 %v1040
    %1745 = vmatpush.bf16.msra.mxu0 %v1036
    %1746 = vmatpush.bf16.msra.mxu0 %v1032
    %1747 = vmatpush.bf16.msra.mxu0 %v1028
    %1748 = vmatpush.bf16.msra.mxu0 %v1024
    %1749 = vmatpush.bf16.msra.mxu0 %v1020
    %1750 = vmatpush.bf16.msra.mxu0 %v1016
    %1751 = vmatmul.bf16.gmra.mxu0 %v359
    %v1752 = vpop.f32.mrf.mxu0
    %v1753 = vadd.f32 %v1724, %v1752
    %v1754 = vpop.f32.mrf.mxu0
    %v1755 = vadd.f32 %v1726, %v1754
    %1756 = vmatmul.bf16.gmra.mxu0 %v365
    %v1757 = vpop.f32.mrf.mxu0
    %v1758 = vadd.f32 %v1729, %v1757
    %v1759 = vpop.f32.mrf.mxu0
    %v1760 = vadd.f32 %v1731, %v1759
    %1761 = vmatmul.bf16.gmra.mxu0 %v371
    %v1762 = vpop.f32.mrf.mxu0
    %v1763 = vadd.f32 %v1734, %v1762
    %v1764 = vpop.f32.mrf.mxu0
    %v1765 = vadd.f32 %v1736, %v1764
    %1766 = vmatmul.bf16.gmra.mxu0 %v377
    %v1767 = vpop.f32.mrf.mxu0
    %v1768 = vadd.f32 %v1739, %v1767
    %v1769 = vpop.f32.mrf.mxu0
    %v1770 = vadd.f32 %v1741, %v1769
    %1771 = vdwg.mxu0
    %1772 = vmatpush.bf16.msra.mxu0 %v1076
    %1773 = vmatpush.bf16.msra.mxu0 %v1072
    %1774 = vmatpush.bf16.msra.mxu0 %v1068
    %1775 = vmatpush.bf16.msra.mxu0 %v1064
    %1776 = vmatpush.bf16.msra.mxu0 %v1060
    %1777 = vmatpush.bf16.msra.mxu0 %v1056
    %1778 = vmatpush.bf16.msra.mxu0 %v1052
    %1779 = vmatpush.bf16.msra.mxu0 %v1048
    %1780 = vmatmul.bf16.gmra.mxu0 %v360
    %v1781 = vpop.f32.mrf.mxu0
    %v1782 = vadd.f32 %v1753, %v1781
    %v1783 = vpop.f32.mrf.mxu0
    %v1784 = vadd.f32 %v1755, %v1783
    %1785 = vmatmul.bf16.gmra.mxu0 %v366
    %v1786 = vpop.f32.mrf.mxu0
    %v1787 = vadd.f32 %v1758, %v1786
    %v1788 = vpop.f32.mrf.mxu0
    %v1789 = vadd.f32 %v1760, %v1788
    %1790 = vmatmul.bf16.gmra.mxu0 %v372
    %v1791 = vpop.f32.mrf.mxu0
    %v1792 = vadd.f32 %v1763, %v1791
    %v1793 = vpop.f32.mrf.mxu0
    %v1794 = vadd.f32 %v1765, %v1793
    %1795 = vmatmul.bf16.gmra.mxu0 %v378
    %v1796 = vpop.f32.mrf.mxu0
    %v1797 = vadd.f32 %v1768, %v1796
    %v1798 = vpop.f32.mrf.mxu0
    %v1799 = vadd.f32 %v1770, %v1798
    %1800 = vdwg.mxu0
    %1801 = vmatpush.bf16.msra.mxu0 %v1108
    %1802 = vmatpush.bf16.msra.mxu0 %v1104
    %1803 = vmatpush.bf16.msra.mxu0 %v1100
    %1804 = vmatpush.bf16.msra.mxu0 %v1096
    %1805 = vmatpush.bf16.msra.mxu0 %v1092
    %1806 = vmatpush.bf16.msra.mxu0 %v1088
    %1807 = vmatpush.bf16.msra.mxu0 %v1084
    %1808 = vmatpush.bf16.msra.mxu0 %v1080
    %1809 = vmatmul.bf16.gmra.mxu0 %v361
    %v1810 = vpop.f32.mrf.mxu0
    %v1811 = vadd.f32 %v1782, %v1810
    %v1812 = vpop.f32.mrf.mxu0
    %v1813 = vadd.f32 %v1784, %v1812
    %1814 = vmatmul.bf16.gmra.mxu0 %v367
    %v1815 = vpop.f32.mrf.mxu0
    %v1816 = vadd.f32 %v1787, %v1815
    %v1817 = vpop.f32.mrf.mxu0
    %v1818 = vadd.f32 %v1789, %v1817
    %1819 = vmatmul.bf16.gmra.mxu0 %v373
    %v1820 = vpop.f32.mrf.mxu0
    %v1821 = vadd.f32 %v1792, %v1820
    %v1822 = vpop.f32.mrf.mxu0
    %v1823 = vadd.f32 %v1794, %v1822
    %1824 = vmatmul.bf16.gmra.mxu0 %v379
    %v1825 = vpop.f32.mrf.mxu0
    %v1826 = vadd.f32 %v1797, %v1825
    %v1827 = vpop.f32.mrf.mxu0
    %v1828 = vadd.f32 %v1799, %v1827
    %1829 = vdwg.mxu0
    %1830 = vmatpush.bf16.msra.mxu0 %v1140
    %1831 = vmatpush.bf16.msra.mxu0 %v1136
    %1832 = vmatpush.bf16.msra.mxu0 %v1132
    %1833 = vmatpush.bf16.msra.mxu0 %v1128
    %1834 = vmatpush.bf16.msra.mxu0 %v1124
    %1835 = vmatpush.bf16.msra.mxu0 %v1120
    %1836 = vmatpush.bf16.msra.mxu0 %v1116
    %1837 = vmatpush.bf16.msra.mxu0 %v1112
    %1838 = vmatmul.bf16.gmra.mxu0 %v362
    %v1839 = vpop.f32.mrf.mxu0
    %v1840 = vadd.f32 %v1811, %v1839
    %v1841 = vpop.f32.mrf.mxu0
    %v1842 = vadd.f32 %v1813, %v1841
    %1843 = vmatmul.bf16.gmra.mxu0 %v368
    %v1844 = vpop.f32.mrf.mxu0
    %v1845 = vadd.f32 %v1816, %v1844
    %v1846 = vpop.f32.mrf.mxu0
    %v1847 = vadd.f32 %v1818, %v1846
    %1848 = vmatmul.bf16.gmra.mxu0 %v374
    %v1849 = vpop.f32.mrf.mxu0
    %v1850 = vadd.f32 %v1821, %v1849
    %v1851 = vpop.f32.mrf.mxu0
    %v1852 = vadd.f32 %v1823, %v1851
    %1853 = vmatmul.bf16.gmra.mxu0 %v380
    %v1854 = vpop.f32.mrf.mxu0
    %v1855 = vadd.f32 %v1826, %v1854
    %v1856 = vpop.f32.mrf.mxu0
    %v1857 = vadd.f32 %v1828, %v1856
    %1858 = vdwg.mxu0
    %1859 = vmatpush.bf16.msra.mxu0 %v1172
    %1860 = vmatpush.bf16.msra.mxu0 %v1168
    %1861 = vmatpush.bf16.msra.mxu0 %v1164
    %1862 = vmatpush.bf16.msra.mxu0 %v1160
    %1863 = vmatpush.bf16.msra.mxu0 %v1156
    %1864 = vmatpush.bf16.msra.mxu0 %v1152
    %1865 = vmatpush.bf16.msra.mxu0 %v1148
    %1866 = vmatpush.bf16.msra.mxu0 %v1144
    %1867 = vmatmul.bf16.gmra.mxu0 %v363
    %v1868 = vpop.f32.mrf.mxu0
    %v1869 = vadd.f32 %v1840, %v1868
    %v1870 = vpop.f32.mrf.mxu0
    %v1871 = vadd.f32 %v1842, %v1870
    %1872 = vmatmul.bf16.gmra.mxu0 %v369
    %v1873 = vpop.f32.mrf.mxu0
    %v1874 = vadd.f32 %v1845, %v1873
    %v1875 = vpop.f32.mrf.mxu0
    %v1876 = vadd.f32 %v1847, %v1875
    %1877 = vmatmul.bf16.gmra.mxu0 %v375
    %v1878 = vpop.f32.mrf.mxu0
    %v1879 = vadd.f32 %v1850, %v1878
    %v1880 = vpop.f32.mrf.mxu0
    %v1881 = vadd.f32 %v1852, %v1880
    %1882 = vmatmul.bf16.gmra.mxu0 %v381
    %v1883 = vpop.f32.mrf.mxu0
    %v1884 = vadd.f32 %v1855, %v1883
    %v1885 = vpop.f32.mrf.mxu0
    %v1886 = vadd.f32 %v1857, %v1885
    %1887 = vdwg.mxu0
    %1888 = vmatpush.bf16.msra.mxu0 %v1013
    %1889 = vmatpush.bf16.msra.mxu0 %v1009
    %1890 = vmatpush.bf16.msra.mxu0 %v1005
    %1891 = vmatpush.bf16.msra.mxu0 %v1001
    %1892 = vmatpush.bf16.msra.mxu0 %v997
    %1893 = vmatpush.bf16.msra.mxu0 %v993
    %1894 = vmatpush.bf16.msra.mxu0 %v989
    %1895 = vmatpush.bf16.msra.mxu0 %v985
    %1896 = vmatmul.bf16.gmra.mxu0 %v358
    %v1897 = vpop.f32.mrf.mxu0
    %v1898 = vadd.f32 %v281, %v1897
    %v1899 = vpop.f32.mrf.mxu0
    %v1900 = vadd.f32 %v281, %v1899
    %1901 = vmatmul.bf16.gmra.mxu0 %v364
    %v1902 = vpop.f32.mrf.mxu0
    %v1903 = vadd.f32 %v281, %v1902
    %v1904 = vpop.f32.mrf.mxu0
    %v1905 = vadd.f32 %v281, %v1904
    %1906 = vmatmul.bf16.gmra.mxu0 %v370
    %v1907 = vpop.f32.mrf.mxu0
    %v1908 = vadd.f32 %v281, %v1907
    %v1909 = vpop.f32.mrf.mxu0
    %v1910 = vadd.f32 %v281, %v1909
    %1911 = vmatmul.bf16.gmra.mxu0 %v376
    %v1912 = vpop.f32.mrf.mxu0
    %v1913 = vadd.f32 %v281, %v1912
    %v1914 = vpop.f32.mrf.mxu0
    %v1915 = vadd.f32 %v281, %v1914
    %1916 = vdwg.mxu0
    %1917 = vmatpush.bf16.msra.mxu0 %v1045
    %1918 = vmatpush.bf16.msra.mxu0 %v1041
    %1919 = vmatpush.bf16.msra.mxu0 %v1037
    %1920 = vmatpush.bf16.msra.mxu0 %v1033
    %1921 = vmatpush.bf16.msra.mxu0 %v1029
    %1922 = vmatpush.bf16.msra.mxu0 %v1025
    %1923 = vmatpush.bf16.msra.mxu0 %v1021
    %1924 = vmatpush.bf16.msra.mxu0 %v1017
    %1925 = vmatmul.bf16.gmra.mxu0 %v359
    %v1926 = vpop.f32.mrf.mxu0
    %v1927 = vadd.f32 %v1898, %v1926
    %v1928 = vpop.f32.mrf.mxu0
    %v1929 = vadd.f32 %v1900, %v1928
    %1930 = vmatmul.bf16.gmra.mxu0 %v365
    %v1931 = vpop.f32.mrf.mxu0
    %v1932 = vadd.f32 %v1903, %v1931
    %v1933 = vpop.f32.mrf.mxu0
    %v1934 = vadd.f32 %v1905, %v1933
    %1935 = vmatmul.bf16.gmra.mxu0 %v371
    %v1936 = vpop.f32.mrf.mxu0
    %v1937 = vadd.f32 %v1908, %v1936
    %v1938 = vpop.f32.mrf.mxu0
    %v1939 = vadd.f32 %v1910, %v1938
    %1940 = vmatmul.bf16.gmra.mxu0 %v377
    %v1941 = vpop.f32.mrf.mxu0
    %v1942 = vadd.f32 %v1913, %v1941
    %v1943 = vpop.f32.mrf.mxu0
    %v1944 = vadd.f32 %v1915, %v1943
    %1945 = vdwg.mxu0
    %1946 = vmatpush.bf16.msra.mxu0 %v1077
    %1947 = vmatpush.bf16.msra.mxu0 %v1073
    %1948 = vmatpush.bf16.msra.mxu0 %v1069
    %1949 = vmatpush.bf16.msra.mxu0 %v1065
    %1950 = vmatpush.bf16.msra.mxu0 %v1061
    %1951 = vmatpush.bf16.msra.mxu0 %v1057
    %1952 = vmatpush.bf16.msra.mxu0 %v1053
    %1953 = vmatpush.bf16.msra.mxu0 %v1049
    %1954 = vmatmul.bf16.gmra.mxu0 %v360
    %v1955 = vpop.f32.mrf.mxu0
    %v1956 = vadd.f32 %v1927, %v1955
    %v1957 = vpop.f32.mrf.mxu0
    %v1958 = vadd.f32 %v1929, %v1957
    %1959 = vmatmul.bf16.gmra.mxu0 %v366
    %v1960 = vpop.f32.mrf.mxu0
    %v1961 = vadd.f32 %v1932, %v1960
    %v1962 = vpop.f32.mrf.mxu0
    %v1963 = vadd.f32 %v1934, %v1962
    %1964 = vmatmul.bf16.gmra.mxu0 %v372
    %v1965 = vpop.f32.mrf.mxu0
    %v1966 = vadd.f32 %v1937, %v1965
    %v1967 = vpop.f32.mrf.mxu0
    %v1968 = vadd.f32 %v1939, %v1967
    %1969 = vmatmul.bf16.gmra.mxu0 %v378
    %v1970 = vpop.f32.mrf.mxu0
    %v1971 = vadd.f32 %v1942, %v1970
    %v1972 = vpop.f32.mrf.mxu0
    %v1973 = vadd.f32 %v1944, %v1972
    %1974 = vdwg.mxu0
    %1975 = vmatpush.bf16.msra.mxu0 %v1109
    %1976 = vmatpush.bf16.msra.mxu0 %v1105
    %1977 = vmatpush.bf16.msra.mxu0 %v1101
    %1978 = vmatpush.bf16.msra.mxu0 %v1097
    %1979 = vmatpush.bf16.msra.mxu0 %v1093
    %1980 = vmatpush.bf16.msra.mxu0 %v1089
    %1981 = vmatpush.bf16.msra.mxu0 %v1085
    %1982 = vmatpush.bf16.msra.mxu0 %v1081
    %1983 = vmatmul.bf16.gmra.mxu0 %v361
    %v1984 = vpop.f32.mrf.mxu0
    %v1985 = vadd.f32 %v1956, %v1984
    %v1986 = vpop.f32.mrf.mxu0
    %v1987 = vadd.f32 %v1958, %v1986
    %1988 = vmatmul.bf16.gmra.mxu0 %v367
    %v1989 = vpop.f32.mrf.mxu0
    %v1990 = vadd.f32 %v1961, %v1989
    %v1991 = vpop.f32.mrf.mxu0
    %v1992 = vadd.f32 %v1963, %v1991
    %1993 = vmatmul.bf16.gmra.mxu0 %v373
    %v1994 = vpop.f32.mrf.mxu0
    %v1995 = vadd.f32 %v1966, %v1994
    %v1996 = vpop.f32.mrf.mxu0
    %v1997 = vadd.f32 %v1968, %v1996
    %1998 = vmatmul.bf16.gmra.mxu0 %v379
    %v1999 = vpop.f32.mrf.mxu0
    %v2000 = vadd.f32 %v1971, %v1999
    %v2001 = vpop.f32.mrf.mxu0
    %v2002 = vadd.f32 %v1973, %v2001
    %2003 = vdwg.mxu0
    %2004 = vmatpush.bf16.msra.mxu0 %v1141
    %2005 = vmatpush.bf16.msra.mxu0 %v1137
    %2006 = vmatpush.bf16.msra.mxu0 %v1133
    %2007 = vmatpush.bf16.msra.mxu0 %v1129
    %2008 = vmatpush.bf16.msra.mxu0 %v1125
    %2009 = vmatpush.bf16.msra.mxu0 %v1121
    %2010 = vmatpush.bf16.msra.mxu0 %v1117
    %2011 = vmatpush.bf16.msra.mxu0 %v1113
    %2012 = vmatmul.bf16.gmra.mxu0 %v362
    %v2013 = vpop.f32.mrf.mxu0
    %v2014 = vadd.f32 %v1985, %v2013
    %v2015 = vpop.f32.mrf.mxu0
    %v2016 = vadd.f32 %v1987, %v2015
    %2017 = vmatmul.bf16.gmra.mxu0 %v368
    %v2018 = vpop.f32.mrf.mxu0
    %v2019 = vadd.f32 %v1990, %v2018
    %v2020 = vpop.f32.mrf.mxu0
    %v2021 = vadd.f32 %v1992, %v2020
    %2022 = vmatmul.bf16.gmra.mxu0 %v374
    %v2023 = vpop.f32.mrf.mxu0
    %v2024 = vadd.f32 %v1995, %v2023
    %v2025 = vpop.f32.mrf.mxu0
    %v2026 = vadd.f32 %v1997, %v2025
    %2027 = vmatmul.bf16.gmra.mxu0 %v380
    %v2028 = vpop.f32.mrf.mxu0
    %v2029 = vadd.f32 %v2000, %v2028
    %v2030 = vpop.f32.mrf.mxu0
    %v2031 = vadd.f32 %v2002, %v2030
    %2032 = vdwg.mxu0
    %2033 = vmatpush.bf16.msra.mxu0 %v1173
    %2034 = vmatpush.bf16.msra.mxu0 %v1169
    %2035 = vmatpush.bf16.msra.mxu0 %v1165
    %2036 = vmatpush.bf16.msra.mxu0 %v1161
    %2037 = vmatpush.bf16.msra.mxu0 %v1157
    %2038 = vmatpush.bf16.msra.mxu0 %v1153
    %2039 = vmatpush.bf16.msra.mxu0 %v1149
    %2040 = vmatpush.bf16.msra.mxu0 %v1145
    %2041 = vmatmul.bf16.gmra.mxu0 %v363
    %v2042 = vpop.f32.mrf.mxu0
    %v2043 = vadd.f32 %v2014, %v2042
    %v2044 = vpop.f32.mrf.mxu0
    %v2045 = vadd.f32 %v2016, %v2044
    %2046 = vmatmul.bf16.gmra.mxu0 %v369
    %v2047 = vpop.f32.mrf.mxu0
    %v2048 = vadd.f32 %v2019, %v2047
    %v2049 = vpop.f32.mrf.mxu0
    %v2050 = vadd.f32 %v2021, %v2049
    %2051 = vmatmul.bf16.gmra.mxu0 %v375
    %v2052 = vpop.f32.mrf.mxu0
    %v2053 = vadd.f32 %v2024, %v2052
    %v2054 = vpop.f32.mrf.mxu0
    %v2055 = vadd.f32 %v2026, %v2054
    %2056 = vmatmul.bf16.gmra.mxu0 %v381
    %v2057 = vpop.f32.mrf.mxu0
    %v2058 = vadd.f32 %v2029, %v2057
    %v2059 = vpop.f32.mrf.mxu0
    %v2060 = vadd.f32 %v2031, %v2059
    %2061 = vdwg.mxu0
    %v2062 = vmax.f32 %v1521, 0.0
    %v2063 = vmax.f32 %v1695, 0.0
    %v2064 = vmax.f32 %v1869, 0.0
    %v2065 = vmax.f32 %v2043, 0.0
    %v2066 = vmax.f32 %v1523, 0.0
    %v2067 = vmax.f32 %v1697, 0.0
    %v2068 = vmax.f32 %v1871, 0.0
    %v2069 = vmax.f32 %v2045, 0.0
    %v2070 = vmax.f32 %v1526, 0.0
    %v2071 = vmax.f32 %v1700, 0.0
    %v2072 = vmax.f32 %v1874, 0.0
    %v2073 = vmax.f32 %v2048, 0.0
    %v2074 = vmax.f32 %v1528, 0.0
    %v2075 = vmax.f32 %v1702, 0.0
    %v2076 = vmax.f32 %v1876, 0.0
    %v2077 = vmax.f32 %v2050, 0.0
    %v2078 = vmax.f32 %v1531, 0.0
    %v2079 = vmax.f32 %v1705, 0.0
    %v2080 = vmax.f32 %v1879, 0.0
    %v2081 = vmax.f32 %v2053, 0.0
    %v2082 = vmax.f32 %v1533, 0.0
    %v2083 = vmax.f32 %v1707, 0.0
    %v2084 = vmax.f32 %v1881, 0.0
    %v2085 = vmax.f32 %v2055, 0.0
    %v2086 = vmax.f32 %v1536, 0.0
    %v2087 = vmax.f32 %v1710, 0.0
    %v2088 = vmax.f32 %v1884, 0.0
    %v2089 = vmax.f32 %v2058, 0.0
    %v2090 = vmax.f32 %v1538, 0.0
    %v2091 = vmax.f32 %v1712, 0.0
    %v2092 = vmax.f32 %v1886, 0.0
    %v2093 = vmax.f32 %v2060, 0.0
    %v2094 = vpack.c.bf16 %v2063, %v2062
    %v2095 = vpack.c.bf16 %v2065, %v2064
    %v2096 = vpack.c.bf16 %v2067, %v2066
    %v2097 = vpack.c.bf16 %v2069, %v2068
    %v2098 = vpack.c.bf16 %v2071, %v2070
    %v2099 = vpack.c.bf16 %v2073, %v2072
    %v2100 = vpack.c.bf16 %v2075, %v2074
    %v2101 = vpack.c.bf16 %v2077, %v2076
    %v2102 = vpack.c.bf16 %v2079, %v2078
    %v2103 = vpack.c.bf16 %v2081, %v2080
    %v2104 = vpack.c.bf16 %v2083, %v2082
    %v2105 = vpack.c.bf16 %v2085, %v2084
    %v2106 = vpack.c.bf16 %v2087, %v2086
    %v2107 = vpack.c.bf16 %v2089, %v2088
    %v2108 = vpack.c.bf16 %v2091, %v2090
    %v2109 = vpack.c.bf16 %v2093, %v2092
    %2110 = vst [vmem:[#allocation8] sm:$0xff] %v2094
    %2111 = vst [vmem:[#allocation8 + $0x8] sm:$0xff] %v2095
    %2112 = vst [vmem:[#allocation8 + $0x10] sm:$0xff] %v2096
    %2113 = vst [vmem:[#allocation8 + $0x18] sm:$0xff] %v2097
    %2114 = vst [vmem:[#allocation8 + $0x20] sm:$0xff] %v2098
    %2115 = vst [vmem:[#allocation8 + $0x28] sm:$0xff] %v2099
    %2116 = vst [vmem:[#allocation8 + $0x30] sm:$0xff] %v2100
    %2117 = vst [vmem:[#allocation8 + $0x38] sm:$0xff] %v2101
    %2118 = vst [vmem:[#allocation8 + $0x40] sm:$0xff] %v2102
    %2119 = vst [vmem:[#allocation8 + $0x48] sm:$0xff] %v2103
    %2120 = vst [vmem:[#allocation8 + $0x50] sm:$0xff] %v2104
    %2121 = vst [vmem:[#allocation8 + $0x58] sm:$0xff] %v2105
    %2122 = vst [vmem:[#allocation8 + $0x60] sm:$0xff] %v2106
    %2123 = vst [vmem:[#allocation8 + $0x68] sm:$0xff] %v2107
    %2124 = vst [vmem:[#allocation8 + $0x70] sm:$0xff] %v2108
    %2125 = vst [vmem:[#allocation8 + $0x78] sm:$0xff] %v2109
    // Predicated region
    $region26: #{tpu_custom_call.1} parent=1 // pred_check
      _
    $region27: #{tpu_custom_call.1} parent=1 // pred_check_branch
      %2127 = sbr.rel (0) target = $region29
    $region28: #{tpu_custom_call.1} parent=1 // pred_region
      %2129 = vsyncadd [#allocation4], 0
      %s2130 = sshll.u32 [#allocation8], 4
      %s2131 = int_to_ptr.vmem [resolvable:$true] %s2130
      %s2132 = sshll.u32 %s3, 4
      %s2133 = int_to_ptr.hbm [resolvable:$true] %s2132
      %2138 = dma.vmem_to_hbm [thread:$0]  %s2131, 2048, %s2133, [#allocation4], 256, 256, 16
    $region29: #{tpu_custom_call.1} parent=1 // pred_fallthru
      _
    // Predicated region
    $region30: #{tpu_custom_call.1} parent=1 // pred_check
      _
    $region31: #{tpu_custom_call.1} parent=1 // pred_check_branch
      %2140 = sbr.rel (0) target = $region33
    $region32: #{tpu_custom_call.1} parent=1 // pred_region
      %2142 = dma.done [#allocation4], 2048
    $region33: #{tpu_custom_call.1} parent=1 // pred_fallthru
      _
    %2143 = vsyncpa [#allocation3], 1
    %2144 = vsyncpa [#allocation6], 1
    %2145 = vsyncpa [#allocation4], 1

</llo_original>
